<compile_context>
chip_gen: v5e
topology: v5e:2x2
jax: 0.10.0
libtpu: 0.0.40
codegen_flags: <defaults>
</compile_context>

<pallas_src>
import functools

import jax
import jax.numpy as jnp
from jax.experimental import pallas as pl
from jax.experimental.pallas import tpu as pltpu


def _attn_kernel(x_ref, wqkv_ref, wproj_ref, b_ref, o_ref, qkv_scr, attn_scr,
                 *, num_heads, head_dim, seq_len, block_b, scale):
    # x_ref    : (M, C)      input rows of this block (M = block_b * N)
    # wqkv_ref : (C, 3C)     fused, pre-transposed qkv weight (bf16)
    # wproj_ref: (C, C)      pre-transposed proj weight (bf16)
    # b_ref    : (1, C) f32  proj bias
    # o_ref    : (M, C)      output rows
    # qkv_scr  : (M, 3C) f32 VMEM scratch holding the fused qkv projection
    # attn_scr : (M, C)  f32 VMEM scratch holding the per-head attention output
    H, hd, N, TB = num_heads, head_dim, seq_len, block_b
    C = H * hd
    del TB  # loop bounds below use block_b directly
    cdt = wqkv_ref.dtype

    # --- Fused q/k/v projection: one (M, C) x (C, 3C) matmul, f32 accum. ---
    x2d = x_ref[...].astype(cdt)
    qkv_scr[...] = jnp.dot(x2d, wqkv_ref[...],
                           preferred_element_type=jnp.float32)

    # --- Attention core, per (batch element, head), all in f32. ---
    # The column layout of qkv_scr is [q | k | v] x [head] x [head_dim],
    # matching PyTorch's reshape(B, N, 3, H, hd).
    for t in range(block_b):
        r0, r1 = t * N, (t + 1) * N
        for h in range(H):
            c0, c1 = h * hd, (h + 1) * hd
            q_th = qkv_scr[r0:r1, c0:c1]                       # (N, hd)
            k_th = qkv_scr[r0:r1, C + c0:C + c1]               # (N, hd)
            v_th = qkv_scr[r0:r1, 2 * C + c0:2 * C + c1]       # (N, hd)

            # scores: (N, N), scale applied in f32.
            s = jnp.einsum('nd,md->nm', q_th, k_th,
                           preferred_element_type=jnp.float32) * scale
            s = s - jnp.max(s, axis=-1, keepdims=True)
            p = jnp.exp(s)
            p = p / jnp.sum(p, axis=-1, keepdims=True)         # exact softmax

            o_th = jnp.einsum('nm,md->nd', p, v_th,
                              preferred_element_type=jnp.float32)  # (N, hd)
            attn_scr[r0:r1, c0:c1] = o_th

    # --- Fused output projection + bias, once over the whole block. ---
    y = jnp.dot(attn_scr[...].astype(cdt), wproj_ref[...],
                preferred_element_type=jnp.float32) + b_ref[...]
    o_ref[...] = y.astype(o_ref.dtype)


def _pick_block_b(B, N, target_rows=512):
    """Batch elements per grid step.

    Single grid step when the whole problem is <= ~512 rows (per-step overhead
    dominates at these shapes on every TPU generation); otherwise target ~512
    rows per step while keeping the block's row count a multiple of 8.
    """
    if B * N <= target_rows:
        return B
    cand = min(B, max(1, target_rows // max(N, 1)))
    for tb in range(cand, 0, -1):
        if B % tb == 0 and ((tb * N) % 8 == 0 or tb == B):
            return tb
    return B


def attention_forward(x, w_qkv, w_proj, b_proj, num_heads,
                      compute_dtype=jnp.bfloat16, block_b=None):
    """x: (B, N, C); w_qkv: (3C, C); w_proj: (C, C); b_proj: (C,)."""
    B, N, C = x.shape
    H = num_heads
    hd = C // H
    scale = hd ** (-0.5)

    # Fused, pre-transposed weights (out = x @ W^T in PyTorch's Linear).
    wqkv_t = jnp.transpose(w_qkv).astype(compute_dtype)      # (C, 3C)
    wproj_t = jnp.transpose(w_proj).astype(compute_dtype)    # (C, C)
    bp = b_proj.reshape(1, C).astype(jnp.float32)

    tb = _pick_block_b(B, N) if block_b is None else block_b
    assert B % tb == 0
    M = tb * N

    # Flatten batch/sequence so each grid step is one large-M row block.
    x2d = x.reshape(B * N, C).astype(compute_dtype)

    kernel = functools.partial(
        _attn_kernel, num_heads=H, head_dim=hd, seq_len=N, block_b=tb,
        scale=scale)

    out2d = pl.pallas_call(
        kernel,
        out_shape=jax.ShapeDtypeStruct((B * N, C), x.dtype),
        grid=(B // tb,),
        in_specs=[
            pl.BlockSpec((M, C), lambda b: (b, 0)),          # x rows
            pl.BlockSpec((C, 3 * C), lambda b: (0, 0)),      # fused Wqkv^T
            pl.BlockSpec((C, C), lambda b: (0, 0)),          # Wproj^T
            pl.BlockSpec((1, C), lambda b: (0, 0)),          # proj bias
        ],
        out_specs=pl.BlockSpec((M, C), lambda b: (b, 0)),
        scratch_shapes=[
            pltpu.VMEM((M, 3 * C), jnp.float32),             # fused qkv
            pltpu.VMEM((M, C), jnp.float32),                 # attention output
        ],
        compiler_params=pltpu.CompilerParams(
            dimension_semantics=("parallel",)),
    )(x2d, wqkv_t, wproj_t, bp)

    return out2d.reshape(B, N, C)


def attention_reference(x, w_qkv, w_proj, b_proj, num_heads):
    """Pure-JAX f32 reference mirroring the PyTorch forward (comb=False)."""
    B, N, C = x.shape
    hd = C // num_heads
    scale = hd ** (-0.5)
    qkv = x @ w_qkv.T                                            # (B, N, 3C)
    qkv = qkv.reshape(B, N, 3, num_heads, hd).transpose(2, 0, 3, 1, 4)
    q, k, v = qkv[0], qkv[1], qkv[2]                             # (B, H, N, hd)
    attn = (q @ jnp.swapaxes(k, -2, -1)) * scale                 # (B, H, N, N)
    attn = jax.nn.softmax(attn, axis=-1)
    o = (attn @ v).transpose(0, 2, 1, 3).reshape(B, N, C)        # (B, N, C)
    return o @ w_proj.T + b_proj


if __name__ == "__main__":
    # Small shapes consistent with the module: B=2, N=16 tokens, C=64 channels,
    # 8 heads -> head_dim = 8.  qkv_bias=False (default), proj has bias.
    B, N, C, H = 2, 16, 64, 8

    key = jax.random.PRNGKey(0)
    kx, kqkv, kproj, kb = jax.random.split(key, 4)

    x = jax.random.normal(kx, (B, N, C), dtype=jnp.float32)
    w_qkv = jax.random.normal(kqkv, (3 * C, C), dtype=jnp.float32) * (1.0 / C ** 0.5)
    w_proj = jax.random.normal(kproj, (C, C), dtype=jnp.float32) * (1.0 / C ** 0.5)
    b_proj = jax.random.normal(kb, (C,), dtype=jnp.float32) * 0.02

    out = attention_forward(x, w_qkv, w_proj, b_proj, H)
    out = jax.block_until_ready(out)

    ref = attention_reference(x, w_qkv, w_proj, b_proj, H)
    assert out.shape == (B, N, C)
    # bf16 operands in the two projection matmuls -> loosened tolerance vs the
    # f32 reference (softmax itself is exact f32).
    err = float(jnp.max(jnp.abs(out - ref)))
    assert jnp.allclose(out, ref, atol=5e-2, rtol=5e-2), f"max abs err {err}"

    print("KERNEL_OK")
</pallas_src>

<mosaic_0001>
module attributes {stable_mosaic.version = 11 : i64} {
  func.func @_attn_kernel(%arg0: i32, %arg1: memref<32x64xbf16, #tpu.memory_space<vmem>>, %arg2: memref<64x192xbf16, #tpu.memory_space<vmem>>, %arg3: memref<64x64xbf16, #tpu.memory_space<vmem>>, %arg4: memref<1x64xf32, #tpu.memory_space<vmem>>, %arg5: memref<32x64xf32, #tpu.memory_space<vmem>>, %arg6: memref<32x192xf32, #tpu.memory_space<vmem>>, %arg7: memref<32x64xf32, #tpu.memory_space<vmem>>) attributes {dimension_semantics = [#tpu.dimension_semantics<parallel>], iteration_bounds = array<i64: 1>, scalar_prefetch = 0 : i64, scratch_operands = 2 : i64, tpu.core_type = #tpu.core_type<tc>, window_params = [{transform_indices = @transform_0, window_bounds = array<i64: 32, 64>}, {pipeline_mode = #tpu.pipeline_mode<synchronous>, transform_indices = @transform_1, window_bounds = array<i64: 64, 192>}, {pipeline_mode = #tpu.pipeline_mode<synchronous>, transform_indices = @transform_2, window_bounds = array<i64: 64, 64>}, {pipeline_mode = #tpu.pipeline_mode<synchronous>, transform_indices = @transform_3, window_bounds = array<i64: 1, 64>}, {transform_indices = @transform_4, window_bounds = array<i64: 32, 64>}]} {
    %c0 = arith.constant 0 : index
    %c0_0 = arith.constant 0 : index
    %0 = vector.load %arg1[%c0, %c0_0] : memref<32x64xbf16, #tpu.memory_space<vmem>>, vector<32x64xbf16>
    %c0_1 = arith.constant 0 : index
    %c0_2 = arith.constant 0 : index
    %1 = vector.load %arg2[%c0_1, %c0_2] : memref<64x192xbf16, #tpu.memory_space<vmem>>, vector<64x192xbf16>
    %cst = arith.constant dense<0.000000e+00> : vector<32x192xf32>
    %2 = tpu.matmul %0, %1, %cst {dimension_numbers = #tpu.dot_dimension_numbers<[1], [0], [0], [1], [0, 0, 1, 1], [], []>} : vector<32x64xbf16>, vector<64x192xbf16>, vector<32x192xf32> -> vector<32x192xf32>
    %c0_3 = arith.constant 0 : index
    %c0_4 = arith.constant 0 : index
    %3 = vector.load %arg6[%c0_3, %c0_4] : memref<32x192xf32, #tpu.memory_space<vmem>>, vector<32x192xf32>
    tpu.vector_store %arg6[%c0_3, %c0_4], %2 {strides = array<i32>} : memref<32x192xf32, #tpu.memory_space<vmem>>, vector<32x192xf32>,
    %c0_5 = arith.constant 0 : index
    %c0_6 = arith.constant 0 : index
    %4 = vector.load %arg6[%c0_5, %c0_6] : memref<32x192xf32, #tpu.memory_space<vmem>>, vector<16x8xf32>
    %c0_7 = arith.constant 0 : index
    %c64 = arith.constant 64 : index
    %5 = vector.load %arg6[%c0_7, %c64] : memref<32x192xf32, #tpu.memory_space<vmem>>, vector<16x8xf32>
    %c0_8 = arith.constant 0 : index
    %c128 = arith.constant 128 : index
    %6 = vector.load %arg6[%c0_8, %c128] : memref<32x192xf32, #tpu.memory_space<vmem>>, vector<16x8xf32>
    "tpu.trace_start"() <{level = 10 : i32, message = "nd,md->nm"}> : () -> ()
    %cst_9 = arith.constant dense<0.000000e+00> : vector<16x16xf32>
    %7 = tpu.matmul %4, %5, %cst_9 {dimension_numbers = #tpu.dot_dimension_numbers<[1], [1], [0], [0], [0, 0, 1, 0], [], []>} : vector<16x8xf32>, vector<16x8xf32>, vector<16x16xf32> -> vector<16x16xf32>
    "tpu.trace_stop"() : () -> ()
    %cst_10 = arith.constant 0.353553385 : f32
    %8 = vector.broadcast %cst_10 : f32 to vector<16x16xf32>
    %9 = arith.mulf %7, %8 : vector<16x16xf32>
    %cst_11 = arith.constant dense<0xFF800000> : vector<16xf32>
    %10 = vector.multi_reduction <maximumf>, %9, %cst_11 [1] : vector<16x16xf32> to vector<16xf32>
    %11 = vector.shape_cast %10 : vector<16xf32> to vector<16x1xf32>
    %12 = vector.broadcast %11 : vector<16x1xf32> to vector<16x16xf32>
    %13 = arith.subf %9, %12 : vector<16x16xf32>
    %14 = math.exp %13 : vector<16x16xf32>
    %cst_12 = arith.constant dense<0.000000e+00> : vector<16xf32>
    %15 = vector.multi_reduction <add>, %14, %cst_12 [1] : vector<16x16xf32> to vector<16xf32>
    %16 = vector.shape_cast %15 : vector<16xf32> to vector<16x1xf32>
    %17 = vector.broadcast %16 : vector<16x1xf32> to vector<16x16xf32>
    %18 = arith.divf %14, %17 : vector<16x16xf32>
    "tpu.trace_start"() <{level = 10 : i32, message = "nm,md->nd"}> : () -> ()
    %cst_13 = arith.constant dense<0.000000e+00> : vector<16x8xf32>
    %19 = tpu.matmul %18, %6, %cst_13 {dimension_numbers = #tpu.dot_dimension_numbers<[1], [0], [0], [1], [0, 0, 1, 1], [], []>} : vector<16x16xf32>, vector<16x8xf32>, vector<16x8xf32> -> vector<16x8xf32>
    "tpu.trace_stop"() : () -> ()
    %c0_14 = arith.constant 0 : index
    %c0_15 = arith.constant 0 : index
    %20 = vector.load %arg7[%c0_14, %c0_15] : memref<32x64xf32, #tpu.memory_space<vmem>>, vector<16x8xf32>
    tpu.vector_store %arg7[%c0_14, %c0_15], %19 {strides = array<i32>} : memref<32x64xf32, #tpu.memory_space<vmem>>, vector<16x8xf32>,
    %c0_16 = arith.constant 0 : index
    %c8 = arith.constant 8 : index
    %21 = vector.load %arg6[%c0_16, %c8] : memref<32x192xf32, #tpu.memory_space<vmem>>, vector<16x8xf32>
    %c0_17 = arith.constant 0 : index
    %c72 = arith.constant 72 : index
    %22 = vector.load %arg6[%c0_17, %c72] : memref<32x192xf32, #tpu.memory_space<vmem>>, vector<16x8xf32>
    %c0_18 = arith.constant 0 : index
    %c136 = arith.constant 136 : index
    %23 = vector.load %arg6[%c0_18, %c136] : memref<32x192xf32, #tpu.memory_space<vmem>>, vector<16x8xf32>
    "tpu.trace_start"() <{level = 10 : i32, message = "nd,md->nm"}> : () -> ()
    %cst_19 = arith.constant dense<0.000000e+00> : vector<16x16xf32>
    %24 = tpu.matmul %21, %22, %cst_19 {dimension_numbers = #tpu.dot_dimension_numbers<[1], [1], [0], [0], [0, 0, 1, 0], [], []>} : vector<16x8xf32>, vector<16x8xf32>, vector<16x16xf32> -> vector<16x16xf32>
    "tpu.trace_stop"() : () -> ()
    %cst_20 = arith.constant 0.353553385 : f32
    %25 = vector.broadcast %cst_20 : f32 to vector<16x16xf32>
    %26 = arith.mulf %24, %25 : vector<16x16xf32>
    %cst_21 = arith.constant dense<0xFF800000> : vector<16xf32>
    %27 = vector.multi_reduction <maximumf>, %26, %cst_21 [1] : vector<16x16xf32> to vector<16xf32>
    %28 = vector.shape_cast %27 : vector<16xf32> to vector<16x1xf32>
    %29 = vector.broadcast %28 : vector<16x1xf32> to vector<16x16xf32>
    %30 = arith.subf %26, %29 : vector<16x16xf32>
    %31 = math.exp %30 : vector<16x16xf32>
    %cst_22 = arith.constant dense<0.000000e+00> : vector<16xf32>
    %32 = vector.multi_reduction <add>, %31, %cst_22 [1] : vector<16x16xf32> to vector<16xf32>
    %33 = vector.shape_cast %32 : vector<16xf32> to vector<16x1xf32>
    %34 = vector.broadcast %33 : vector<16x1xf32> to vector<16x16xf32>
    %35 = arith.divf %31, %34 : vector<16x16xf32>
    "tpu.trace_start"() <{level = 10 : i32, message = "nm,md->nd"}> : () -> ()
    %cst_23 = arith.constant dense<0.000000e+00> : vector<16x8xf32>
    %36 = tpu.matmul %35, %23, %cst_23 {dimension_numbers = #tpu.dot_dimension_numbers<[1], [0], [0], [1], [0, 0, 1, 1], [], []>} : vector<16x16xf32>, vector<16x8xf32>, vector<16x8xf32> -> vector<16x8xf32>
    "tpu.trace_stop"() : () -> ()
    %c0_24 = arith.constant 0 : index
    %c8_25 = arith.constant 8 : index
    %37 = vector.load %arg7[%c0_24, %c8_25] : memref<32x64xf32, #tpu.memory_space<vmem>>, vector<16x8xf32>
    tpu.vector_store %arg7[%c0_24, %c8_25], %36 {strides = array<i32>} : memref<32x64xf32, #tpu.memory_space<vmem>>, vector<16x8xf32>,
    %c0_26 = arith.constant 0 : index
    %c16 = arith.constant 16 : index
    %38 = vector.load %arg6[%c0_26, %c16] : memref<32x192xf32, #tpu.memory_space<vmem>>, vector<16x8xf32>
    %c0_27 = arith.constant 0 : index
    %c80 = arith.constant 80 : index
    %39 = vector.load %arg6[%c0_27, %c80] : memref<32x192xf32, #tpu.memory_space<vmem>>, vector<16x8xf32>
    %c0_28 = arith.constant 0 : index
    %c144 = arith.constant 144 : index
    %40 = vector.load %arg6[%c0_28, %c144] : memref<32x192xf32, #tpu.memory_space<vmem>>, vector<16x8xf32>
    "tpu.trace_start"() <{level = 10 : i32, message = "nd,md->nm"}> : () -> ()
    %cst_29 = arith.constant dense<0.000000e+00> : vector<16x16xf32>
    %41 = tpu.matmul %38, %39, %cst_29 {dimension_numbers = #tpu.dot_dimension_numbers<[1], [1], [0], [0], [0, 0, 1, 0], [], []>} : vector<16x8xf32>, vector<16x8xf32>, vector<16x16xf32> -> vector<16x16xf32>
    "tpu.trace_stop"() : () -> ()
    %cst_30 = arith.constant 0.353553385 : f32
    %42 = vector.broadcast %cst_30 : f32 to vector<16x16xf32>
    %43 = arith.mulf %41, %42 : vector<16x16xf32>
    %cst_31 = arith.constant dense<0xFF800000> : vector<16xf32>
    %44 = vector.multi_reduction <maximumf>, %43, %cst_31 [1] : vector<16x16xf32> to vector<16xf32>
    %45 = vector.shape_cast %44 : vector<16xf32> to vector<16x1xf32>
    %46 = vector.broadcast %45 : vector<16x1xf32> to vector<16x16xf32>
    %47 = arith.subf %43, %46 : vector<16x16xf32>
    %48 = math.exp %47 : vector<16x16xf32>
    %cst_32 = arith.constant dense<0.000000e+00> : vector<16xf32>
    %49 = vector.multi_reduction <add>, %48, %cst_32 [1] : vector<16x16xf32> to vector<16xf32>
    %50 = vector.shape_cast %49 : vector<16xf32> to vector<16x1xf32>
    %51 = vector.broadcast %50 : vector<16x1xf32> to vector<16x16xf32>
    %52 = arith.divf %48, %51 : vector<16x16xf32>
    "tpu.trace_start"() <{level = 10 : i32, message = "nm,md->nd"}> : () -> ()
    %cst_33 = arith.constant dense<0.000000e+00> : vector<16x8xf32>
    %53 = tpu.matmul %52, %40, %cst_33 {dimension_numbers = #tpu.dot_dimension_numbers<[1], [0], [0], [1], [0, 0, 1, 1], [], []>} : vector<16x16xf32>, vector<16x8xf32>, vector<16x8xf32> -> vector<16x8xf32>
    "tpu.trace_stop"() : () -> ()
    %c0_34 = arith.constant 0 : index
    %c16_35 = arith.constant 16 : index
    %54 = vector.load %arg7[%c0_34, %c16_35] : memref<32x64xf32, #tpu.memory_space<vmem>>, vector<16x8xf32>
    tpu.vector_store %arg7[%c0_34, %c16_35], %53 {strides = array<i32>} : memref<32x64xf32, #tpu.memory_space<vmem>>, vector<16x8xf32>,
    %c0_36 = arith.constant 0 : index
    %c24 = arith.constant 24 : index
    %55 = vector.load %arg6[%c0_36, %c24] : memref<32x192xf32, #tpu.memory_space<vmem>>, vector<16x8xf32>
    %c0_37 = arith.constant 0 : index
    %c88 = arith.constant 88 : index
    %56 = vector.load %arg6[%c0_37, %c88] : memref<32x192xf32, #tpu.memory_space<vmem>>, vector<16x8xf32>
    %c0_38 = arith.constant 0 : index
    %c152 = arith.constant 152 : index
    %57 = vector.load %arg6[%c0_38, %c152] : memref<32x192xf32, #tpu.memory_space<vmem>>, vector<16x8xf32>
    "tpu.trace_start"() <{level = 10 : i32, message = "nd,md->nm"}> : () -> ()
    %cst_39 = arith.constant dense<0.000000e+00> : vector<16x16xf32>
    %58 = tpu.matmul %55, %56, %cst_39 {dimension_numbers = #tpu.dot_dimension_numbers<[1], [1], [0], [0], [0, 0, 1, 0], [], []>} : vector<16x8xf32>, vector<16x8xf32>, vector<16x16xf32> -> vector<16x16xf32>
    "tpu.trace_stop"() : () -> ()
    %cst_40 = arith.constant 0.353553385 : f32
    %59 = vector.broadcast %cst_40 : f32 to vector<16x16xf32>
    %60 = arith.mulf %58, %59 : vector<16x16xf32>
    %cst_41 = arith.constant dense<0xFF800000> : vector<16xf32>
    %61 = vector.multi_reduction <maximumf>, %60, %cst_41 [1] : vector<16x16xf32> to vector<16xf32>
    %62 = vector.shape_cast %61 : vector<16xf32> to vector<16x1xf32>
    %63 = vector.broadcast %62 : vector<16x1xf32> to vector<16x16xf32>
    %64 = arith.subf %60, %63 : vector<16x16xf32>
    %65 = math.exp %64 : vector<16x16xf32>
    %cst_42 = arith.constant dense<0.000000e+00> : vector<16xf32>
    %66 = vector.multi_reduction <add>, %65, %cst_42 [1] : vector<16x16xf32> to vector<16xf32>
    %67 = vector.shape_cast %66 : vector<16xf32> to vector<16x1xf32>
    %68 = vector.broadcast %67 : vector<16x1xf32> to vector<16x16xf32>
    %69 = arith.divf %65, %68 : vector<16x16xf32>
    "tpu.trace_start"() <{level = 10 : i32, message = "nm,md->nd"}> : () -> ()
    %cst_43 = arith.constant dense<0.000000e+00> : vector<16x8xf32>
    %70 = tpu.matmul %69, %57, %cst_43 {dimension_numbers = #tpu.dot_dimension_numbers<[1], [0], [0], [1], [0, 0, 1, 1], [], []>} : vector<16x16xf32>, vector<16x8xf32>, vector<16x8xf32> -> vector<16x8xf32>
    "tpu.trace_stop"() : () -> ()
    %c0_44 = arith.constant 0 : index
    %c24_45 = arith.constant 24 : index
    %71 = vector.load %arg7[%c0_44, %c24_45] : memref<32x64xf32, #tpu.memory_space<vmem>>, vector<16x8xf32>
    tpu.vector_store %arg7[%c0_44, %c24_45], %70 {strides = array<i32>} : memref<32x64xf32, #tpu.memory_space<vmem>>, vector<16x8xf32>,
    %c0_46 = arith.constant 0 : index
    %c32 = arith.constant 32 : index
    %72 = vector.load %arg6[%c0_46, %c32] : memref<32x192xf32, #tpu.memory_space<vmem>>, vector<16x8xf32>
    %c0_47 = arith.constant 0 : index
    %c96 = arith.constant 96 : index
    %73 = vector.load %arg6[%c0_47, %c96] : memref<32x192xf32, #tpu.memory_space<vmem>>, vector<16x8xf32>
    %c0_48 = arith.constant 0 : index
    %c160 = arith.constant 160 : index
    %74 = vector.load %arg6[%c0_48, %c160] : memref<32x192xf32, #tpu.memory_space<vmem>>, vector<16x8xf32>
    "tpu.trace_start"() <{level = 10 : i32, message = "nd,md->nm"}> : () -> ()
    %cst_49 = arith.constant dense<0.000000e+00> : vector<16x16xf32>
    %75 = tpu.matmul %72, %73, %cst_49 {dimension_numbers = #tpu.dot_dimension_numbers<[1], [1], [0], [0], [0, 0, 1, 0], [], []>} : vector<16x8xf32>, vector<16x8xf32>, vector<16x16xf32> -> vector<16x16xf32>
    "tpu.trace_stop"() : () -> ()
    %cst_50 = arith.constant 0.353553385 : f32
    %76 = vector.broadcast %cst_50 : f32 to vector<16x16xf32>
    %77 = arith.mulf %75, %76 : vector<16x16xf32>
    %cst_51 = arith.constant dense<0xFF800000> : vector<16xf32>
    %78 = vector.multi_reduction <maximumf>, %77, %cst_51 [1] : vector<16x16xf32> to vector<16xf32>
    %79 = vector.shape_cast %78 : vector<16xf32> to vector<16x1xf32>
    %80 = vector.broadcast %79 : vector<16x1xf32> to vector<16x16xf32>
    %81 = arith.subf %77, %80 : vector<16x16xf32>
    %82 = math.exp %81 : vector<16x16xf32>
    %cst_52 = arith.constant dense<0.000000e+00> : vector<16xf32>
    %83 = vector.multi_reduction <add>, %82, %cst_52 [1] : vector<16x16xf32> to vector<16xf32>
    %84 = vector.shape_cast %83 : vector<16xf32> to vector<16x1xf32>
    %85 = vector.broadcast %84 : vector<16x1xf32> to vector<16x16xf32>
    %86 = arith.divf %82, %85 : vector<16x16xf32>
    "tpu.trace_start"() <{level = 10 : i32, message = "nm,md->nd"}> : () -> ()
    %cst_53 = arith.constant dense<0.000000e+00> : vector<16x8xf32>
    %87 = tpu.matmul %86, %74, %cst_53 {dimension_numbers = #tpu.dot_dimension_numbers<[1], [0], [0], [1], [0, 0, 1, 1], [], []>} : vector<16x16xf32>, vector<16x8xf32>, vector<16x8xf32> -> vector<16x8xf32>
    "tpu.trace_stop"() : () -> ()
    %c0_54 = arith.constant 0 : index
    %c32_55 = arith.constant 32 : index
    %88 = vector.load %arg7[%c0_54, %c32_55] : memref<32x64xf32, #tpu.memory_space<vmem>>, vector<16x8xf32>
    tpu.vector_store %arg7[%c0_54, %c32_55], %87 {strides = array<i32>} : memref<32x64xf32, #tpu.memory_space<vmem>>, vector<16x8xf32>,
    %c0_56 = arith.constant 0 : index
    %c40 = arith.constant 40 : index
    %89 = vector.load %arg6[%c0_56, %c40] : memref<32x192xf32, #tpu.memory_space<vmem>>, vector<16x8xf32>
    %c0_57 = arith.constant 0 : index
    %c104 = arith.constant 104 : index
    %90 = vector.load %arg6[%c0_57, %c104] : memref<32x192xf32, #tpu.memory_space<vmem>>, vector<16x8xf32>
    %c0_58 = arith.constant 0 : index
    %c168 = arith.constant 168 : index
    %91 = vector.load %arg6[%c0_58, %c168] : memref<32x192xf32, #tpu.memory_space<vmem>>, vector<16x8xf32>
    "tpu.trace_start"() <{level = 10 : i32, message = "nd,md->nm"}> : () -> ()
    %cst_59 = arith.constant dense<0.000000e+00> : vector<16x16xf32>
    %92 = tpu.matmul %89, %90, %cst_59 {dimension_numbers = #tpu.dot_dimension_numbers<[1], [1], [0], [0], [0, 0, 1, 0], [], []>} : vector<16x8xf32>, vector<16x8xf32>, vector<16x16xf32> -> vector<16x16xf32>
    "tpu.trace_stop"() : () -> ()
    %cst_60 = arith.constant 0.353553385 : f32
    %93 = vector.broadcast %cst_60 : f32 to vector<16x16xf32>
    %94 = arith.mulf %92, %93 : vector<16x16xf32>
    %cst_61 = arith.constant dense<0xFF800000> : vector<16xf32>
    %95 = vector.multi_reduction <maximumf>, %94, %cst_61 [1] : vector<16x16xf32> to vector<16xf32>
    %96 = vector.shape_cast %95 : vector<16xf32> to vector<16x1xf32>
    %97 = vector.broadcast %96 : vector<16x1xf32> to vector<16x16xf32>
    %98 = arith.subf %94, %97 : vector<16x16xf32>
    %99 = math.exp %98 : vector<16x16xf32>
    %cst_62 = arith.constant dense<0.000000e+00> : vector<16xf32>
    %100 = vector.multi_reduction <add>, %99, %cst_62 [1] : vector<16x16xf32> to vector<16xf32>
    %101 = vector.shape_cast %100 : vector<16xf32> to vector<16x1xf32>
    %102 = vector.broadcast %101 : vector<16x1xf32> to vector<16x16xf32>
    %103 = arith.divf %99, %102 : vector<16x16xf32>
    "tpu.trace_start"() <{level = 10 : i32, message = "nm,md->nd"}> : () -> ()
    %cst_63 = arith.constant dense<0.000000e+00> : vector<16x8xf32>
    %104 = tpu.matmul %103, %91, %cst_63 {dimension_numbers = #tpu.dot_dimension_numbers<[1], [0], [0], [1], [0, 0, 1, 1], [], []>} : vector<16x16xf32>, vector<16x8xf32>, vector<16x8xf32> -> vector<16x8xf32>
    "tpu.trace_stop"() : () -> ()
    %c0_64 = arith.constant 0 : index
    %c40_65 = arith.constant 40 : index
    %105 = vector.load %arg7[%c0_64, %c40_65] : memref<32x64xf32, #tpu.memory_space<vmem>>, vector<16x8xf32>
    tpu.vector_store %arg7[%c0_64, %c40_65], %104 {strides = array<i32>} : memref<32x64xf32, #tpu.memory_space<vmem>>, vector<16x8xf32>,
    %c0_66 = arith.constant 0 : index
    %c48 = arith.constant 48 : index
    %106 = vector.load %arg6[%c0_66, %c48] : memref<32x192xf32, #tpu.memory_space<vmem>>, vector<16x8xf32>
    %c0_67 = arith.constant 0 : index
    %c112 = arith.constant 112 : index
    %107 = vector.load %arg6[%c0_67, %c112] : memref<32x192xf32, #tpu.memory_space<vmem>>, vector<16x8xf32>
    %c0_68 = arith.constant 0 : index
    %c176 = arith.constant 176 : index
    %108 = vector.load %arg6[%c0_68, %c176] : memref<32x192xf32, #tpu.memory_space<vmem>>, vector<16x8xf32>
    "tpu.trace_start"() <{level = 10 : i32, message = "nd,md->nm"}> : () -> ()
    %cst_69 = arith.constant dense<0.000000e+00> : vector<16x16xf32>
    %109 = tpu.matmul %106, %107, %cst_69 {dimension_numbers = #tpu.dot_dimension_numbers<[1], [1], [0], [0], [0, 0, 1, 0], [], []>} : vector<16x8xf32>, vector<16x8xf32>, vector<16x16xf32> -> vector<16x16xf32>
    "tpu.trace_stop"() : () -> ()
    %cst_70 = arith.constant 0.353553385 : f32
    %110 = vector.broadcast %cst_70 : f32 to vector<16x16xf32>
    %111 = arith.mulf %109, %110 : vector<16x16xf32>
    %cst_71 = arith.constant dense<0xFF800000> : vector<16xf32>
    %112 = vector.multi_reduction <maximumf>, %111, %cst_71 [1] : vector<16x16xf32> to vector<16xf32>
    %113 = vector.shape_cast %112 : vector<16xf32> to vector<16x1xf32>
    %114 = vector.broadcast %113 : vector<16x1xf32> to vector<16x16xf32>
    %115 = arith.subf %111, %114 : vector<16x16xf32>
    %116 = math.exp %115 : vector<16x16xf32>
    %cst_72 = arith.constant dense<0.000000e+00> : vector<16xf32>
    %117 = vector.multi_reduction <add>, %116, %cst_72 [1] : vector<16x16xf32> to vector<16xf32>
    %118 = vector.shape_cast %117 : vector<16xf32> to vector<16x1xf32>
    %119 = vector.broadcast %118 : vector<16x1xf32> to vector<16x16xf32>
    %120 = arith.divf %116, %119 : vector<16x16xf32>
    "tpu.trace_start"() <{level = 10 : i32, message = "nm,md->nd"}> : () -> ()
    %cst_73 = arith.constant dense<0.000000e+00> : vector<16x8xf32>
    %121 = tpu.matmul %120, %108, %cst_73 {dimension_numbers = #tpu.dot_dimension_numbers<[1], [0], [0], [1], [0, 0, 1, 1], [], []>} : vector<16x16xf32>, vector<16x8xf32>, vector<16x8xf32> -> vector<16x8xf32>
    "tpu.trace_stop"() : () -> ()
    %c0_74 = arith.constant 0 : index
    %c48_75 = arith.constant 48 : index
    %122 = vector.load %arg7[%c0_74, %c48_75] : memref<32x64xf32, #tpu.memory_space<vmem>>, vector<16x8xf32>
    tpu.vector_store %arg7[%c0_74, %c48_75], %121 {strides = array<i32>} : memref<32x64xf32, #tpu.memory_space<vmem>>, vector<16x8xf32>,
    %c0_76 = arith.constant 0 : index
    %c56 = arith.constant 56 : index
    %123 = vector.load %arg6[%c0_76, %c56] : memref<32x192xf32, #tpu.memory_space<vmem>>, vector<16x8xf32>
    %c0_77 = arith.constant 0 : index
    %c120 = arith.constant 120 : index
    %124 = vector.load %arg6[%c0_77, %c120] : memref<32x192xf32, #tpu.memory_space<vmem>>, vector<16x8xf32>
    %c0_78 = arith.constant 0 : index
    %c184 = arith.constant 184 : index
    %125 = vector.load %arg6[%c0_78, %c184] : memref<32x192xf32, #tpu.memory_space<vmem>>, vector<16x8xf32>
    "tpu.trace_start"() <{level = 10 : i32, message = "nd,md->nm"}> : () -> ()
    %cst_79 = arith.constant dense<0.000000e+00> : vector<16x16xf32>
    %126 = tpu.matmul %123, %124, %cst_79 {dimension_numbers = #tpu.dot_dimension_numbers<[1], [1], [0], [0], [0, 0, 1, 0], [], []>} : vector<16x8xf32>, vector<16x8xf32>, vector<16x16xf32> -> vector<16x16xf32>
    "tpu.trace_stop"() : () -> ()
    %cst_80 = arith.constant 0.353553385 : f32
    %127 = vector.broadcast %cst_80 : f32 to vector<16x16xf32>
    %128 = arith.mulf %126, %127 : vector<16x16xf32>
    %cst_81 = arith.constant dense<0xFF800000> : vector<16xf32>
    %129 = vector.multi_reduction <maximumf>, %128, %cst_81 [1] : vector<16x16xf32> to vector<16xf32>
    %130 = vector.shape_cast %129 : vector<16xf32> to vector<16x1xf32>
    %131 = vector.broadcast %130 : vector<16x1xf32> to vector<16x16xf32>
    %132 = arith.subf %128, %131 : vector<16x16xf32>
    %133 = math.exp %132 : vector<16x16xf32>
    %cst_82 = arith.constant dense<0.000000e+00> : vector<16xf32>
    %134 = vector.multi_reduction <add>, %133, %cst_82 [1] : vector<16x16xf32> to vector<16xf32>
    %135 = vector.shape_cast %134 : vector<16xf32> to vector<16x1xf32>
    %136 = vector.broadcast %135 : vector<16x1xf32> to vector<16x16xf32>
    %137 = arith.divf %133, %136 : vector<16x16xf32>
    "tpu.trace_start"() <{level = 10 : i32, message = "nm,md->nd"}> : () -> ()
    %cst_83 = arith.constant dense<0.000000e+00> : vector<16x8xf32>
    %138 = tpu.matmul %137, %125, %cst_83 {dimension_numbers = #tpu.dot_dimension_numbers<[1], [0], [0], [1], [0, 0, 1, 1], [], []>} : vector<16x16xf32>, vector<16x8xf32>, vector<16x8xf32> -> vector<16x8xf32>
    "tpu.trace_stop"() : () -> ()
    %c0_84 = arith.constant 0 : index
    %c56_85 = arith.constant 56 : index
    %139 = vector.load %arg7[%c0_84, %c56_85] : memref<32x64xf32, #tpu.memory_space<vmem>>, vector<16x8xf32>
    tpu.vector_store %arg7[%c0_84, %c56_85], %138 {strides = array<i32>} : memref<32x64xf32, #tpu.memory_space<vmem>>, vector<16x8xf32>,
    %c16_86 = arith.constant 16 : index
    %c0_87 = arith.constant 0 : index
    %140 = vector.load %arg6[%c16_86, %c0_87] : memref<32x192xf32, #tpu.memory_space<vmem>>, vector<16x8xf32>
    %c16_88 = arith.constant 16 : index
    %c64_89 = arith.constant 64 : index
    %141 = vector.load %arg6[%c16_88, %c64_89] : memref<32x192xf32, #tpu.memory_space<vmem>>, vector<16x8xf32>
    %c16_90 = arith.constant 16 : index
    %c128_91 = arith.constant 128 : index
    %142 = vector.load %arg6[%c16_90, %c128_91] : memref<32x192xf32, #tpu.memory_space<vmem>>, vector<16x8xf32>
    "tpu.trace_start"() <{level = 10 : i32, message = "nd,md->nm"}> : () -> ()
    %cst_92 = arith.constant dense<0.000000e+00> : vector<16x16xf32>
    %143 = tpu.matmul %140, %141, %cst_92 {dimension_numbers = #tpu.dot_dimension_numbers<[1], [1], [0], [0], [0, 0, 1, 0], [], []>} : vector<16x8xf32>, vector<16x8xf32>, vector<16x16xf32> -> vector<16x16xf32>
    "tpu.trace_stop"() : () -> ()
    %cst_93 = arith.constant 0.353553385 : f32
    %144 = vector.broadcast %cst_93 : f32 to vector<16x16xf32>
    %145 = arith.mulf %143, %144 : vector<16x16xf32>
    %cst_94 = arith.constant dense<0xFF800000> : vector<16xf32>
    %146 = vector.multi_reduction <maximumf>, %145, %cst_94 [1] : vector<16x16xf32> to vector<16xf32>
    %147 = vector.shape_cast %146 : vector<16xf32> to vector<16x1xf32>
    %148 = vector.broadcast %147 : vector<16x1xf32> to vector<16x16xf32>
    %149 = arith.subf %145, %148 : vector<16x16xf32>
    %150 = math.exp %149 : vector<16x16xf32>
    %cst_95 = arith.constant dense<0.000000e+00> : vector<16xf32>
    %151 = vector.multi_reduction <add>, %150, %cst_95 [1] : vector<16x16xf32> to vector<16xf32>
    %152 = vector.shape_cast %151 : vector<16xf32> to vector<16x1xf32>
    %153 = vector.broadcast %152 : vector<16x1xf32> to vector<16x16xf32>
    %154 = arith.divf %150, %153 : vector<16x16xf32>
    "tpu.trace_start"() <{level = 10 : i32, message = "nm,md->nd"}> : () -> ()
    %cst_96 = arith.constant dense<0.000000e+00> : vector<16x8xf32>
    %155 = tpu.matmul %154, %142, %cst_96 {dimension_numbers = #tpu.dot_dimension_numbers<[1], [0], [0], [1], [0, 0, 1, 1], [], []>} : vector<16x16xf32>, vector<16x8xf32>, vector<16x8xf32> -> vector<16x8xf32>
    "tpu.trace_stop"() : () -> ()
    %c16_97 = arith.constant 16 : index
    %c0_98 = arith.constant 0 : index
    %156 = vector.load %arg7[%c16_97, %c0_98] : memref<32x64xf32, #tpu.memory_space<vmem>>, vector<16x8xf32>
    tpu.vector_store %arg7[%c16_97, %c0_98], %155 {strides = array<i32>} : memref<32x64xf32, #tpu.memory_space<vmem>>, vector<16x8xf32>,
    %c16_99 = arith.constant 16 : index
    %c8_100 = arith.constant 8 : index
    %157 = vector.load %arg6[%c16_99, %c8_100] : memref<32x192xf32, #tpu.memory_space<vmem>>, vector<16x8xf32>
    %c16_101 = arith.constant 16 : index
    %c72_102 = arith.constant 72 : index
    %158 = vector.load %arg6[%c16_101, %c72_102] : memref<32x192xf32, #tpu.memory_space<vmem>>, vector<16x8xf32>
    %c16_103 = arith.constant 16 : index
    %c136_104 = arith.constant 136 : index
    %159 = vector.load %arg6[%c16_103, %c136_104] : memref<32x192xf32, #tpu.memory_space<vmem>>, vector<16x8xf32>
    "tpu.trace_start"() <{level = 10 : i32, message = "nd,md->nm"}> : () -> ()
    %cst_105 = arith.constant dense<0.000000e+00> : vector<16x16xf32>
    %160 = tpu.matmul %157, %158, %cst_105 {dimension_numbers = #tpu.dot_dimension_numbers<[1], [1], [0], [0], [0, 0, 1, 0], [], []>} : vector<16x8xf32>, vector<16x8xf32>, vector<16x16xf32> -> vector<16x16xf32>
    "tpu.trace_stop"() : () -> ()
    %cst_106 = arith.constant 0.353553385 : f32
    %161 = vector.broadcast %cst_106 : f32 to vector<16x16xf32>
    %162 = arith.mulf %160, %161 : vector<16x16xf32>
    %cst_107 = arith.constant dense<0xFF800000> : vector<16xf32>
    %163 = vector.multi_reduction <maximumf>, %162, %cst_107 [1] : vector<16x16xf32> to vector<16xf32>
    %164 = vector.shape_cast %163 : vector<16xf32> to vector<16x1xf32>
    %165 = vector.broadcast %164 : vector<16x1xf32> to vector<16x16xf32>
    %166 = arith.subf %162, %165 : vector<16x16xf32>
    %167 = math.exp %166 : vector<16x16xf32>
    %cst_108 = arith.constant dense<0.000000e+00> : vector<16xf32>
    %168 = vector.multi_reduction <add>, %167, %cst_108 [1] : vector<16x16xf32> to vector<16xf32>
    %169 = vector.shape_cast %168 : vector<16xf32> to vector<16x1xf32>
    %170 = vector.broadcast %169 : vector<16x1xf32> to vector<16x16xf32>
    %171 = arith.divf %167, %170 : vector<16x16xf32>
    "tpu.trace_start"() <{level = 10 : i32, message = "nm,md->nd"}> : () -> ()
    %cst_109 = arith.constant dense<0.000000e+00> : vector<16x8xf32>
    %172 = tpu.matmul %171, %159, %cst_109 {dimension_numbers = #tpu.dot_dimension_numbers<[1], [0], [0], [1], [0, 0, 1, 1], [], []>} : vector<16x16xf32>, vector<16x8xf32>, vector<16x8xf32> -> vector<16x8xf32>
    "tpu.trace_stop"() : () -> ()
    %c16_110 = arith.constant 16 : index
    %c8_111 = arith.constant 8 : index
    %173 = vector.load %arg7[%c16_110, %c8_111] : memref<32x64xf32, #tpu.memory_space<vmem>>, vector<16x8xf32>
    tpu.vector_store %arg7[%c16_110, %c8_111], %172 {strides = array<i32>} : memref<32x64xf32, #tpu.memory_space<vmem>>, vector<16x8xf32>,
    %c16_112 = arith.constant 16 : index
    %c16_113 = arith.constant 16 : index
    %174 = vector.load %arg6[%c16_112, %c16_113] : memref<32x192xf32, #tpu.memory_space<vmem>>, vector<16x8xf32>
    %c16_114 = arith.constant 16 : index
    %c80_115 = arith.constant 80 : index
    %175 = vector.load %arg6[%c16_114, %c80_115] : memref<32x192xf32, #tpu.memory_space<vmem>>, vector<16x8xf32>
    %c16_116 = arith.constant 16 : index
    %c144_117 = arith.constant 144 : index
    %176 = vector.load %arg6[%c16_116, %c144_117] : memref<32x192xf32, #tpu.memory_space<vmem>>, vector<16x8xf32>
    "tpu.trace_start"() <{level = 10 : i32, message = "nd,md->nm"}> : () -> ()
    %cst_118 = arith.constant dense<0.000000e+00> : vector<16x16xf32>
    %177 = tpu.matmul %174, %175, %cst_118 {dimension_numbers = #tpu.dot_dimension_numbers<[1], [1], [0], [0], [0, 0, 1, 0], [], []>} : vector<16x8xf32>, vector<16x8xf32>, vector<16x16xf32> -> vector<16x16xf32>
    "tpu.trace_stop"() : () -> ()
    %cst_119 = arith.constant 0.353553385 : f32
    %178 = vector.broadcast %cst_119 : f32 to vector<16x16xf32>
    %179 = arith.mulf %177, %178 : vector<16x16xf32>
    %cst_120 = arith.constant dense<0xFF800000> : vector<16xf32>
    %180 = vector.multi_reduction <maximumf>, %179, %cst_120 [1] : vector<16x16xf32> to vector<16xf32>
    %181 = vector.shape_cast %180 : vector<16xf32> to vector<16x1xf32>
    %182 = vector.broadcast %181 : vector<16x1xf32> to vector<16x16xf32>
    %183 = arith.subf %179, %182 : vector<16x16xf32>
    %184 = math.exp %183 : vector<16x16xf32>
    %cst_121 = arith.constant dense<0.000000e+00> : vector<16xf32>
    %185 = vector.multi_reduction <add>, %184, %cst_121 [1] : vector<16x16xf32> to vector<16xf32>
    %186 = vector.shape_cast %185 : vector<16xf32> to vector<16x1xf32>
    %187 = vector.broadcast %186 : vector<16x1xf32> to vector<16x16xf32>
    %188 = arith.divf %184, %187 : vector<16x16xf32>
    "tpu.trace_start"() <{level = 10 : i32, message = "nm,md->nd"}> : () -> ()
    %cst_122 = arith.constant dense<0.000000e+00> : vector<16x8xf32>
    %189 = tpu.matmul %188, %176, %cst_122 {dimension_numbers = #tpu.dot_dimension_numbers<[1], [0], [0], [1], [0, 0, 1, 1], [], []>} : vector<16x16xf32>, vector<16x8xf32>, vector<16x8xf32> -> vector<16x8xf32>
    "tpu.trace_stop"() : () -> ()
    %c16_123 = arith.constant 16 : index
    %c16_124 = arith.constant 16 : index
    %190 = vector.load %arg7[%c16_123, %c16_124] : memref<32x64xf32, #tpu.memory_space<vmem>>, vector<16x8xf32>
    tpu.vector_store %arg7[%c16_123, %c16_124], %189 {strides = array<i32>} : memref<32x64xf32, #tpu.memory_space<vmem>>, vector<16x8xf32>,
    %c16_125 = arith.constant 16 : index
    %c24_126 = arith.constant 24 : index
    %191 = vector.load %arg6[%c16_125, %c24_126] : memref<32x192xf32, #tpu.memory_space<vmem>>, vector<16x8xf32>
    %c16_127 = arith.constant 16 : index
    %c88_128 = arith.constant 88 : index
    %192 = vector.load %arg6[%c16_127, %c88_128] : memref<32x192xf32, #tpu.memory_space<vmem>>, vector<16x8xf32>
    %c16_129 = arith.constant 16 : index
    %c152_130 = arith.constant 152 : index
    %193 = vector.load %arg6[%c16_129, %c152_130] : memref<32x192xf32, #tpu.memory_space<vmem>>, vector<16x8xf32>
    "tpu.trace_start"() <{level = 10 : i32, message = "nd,md->nm"}> : () -> ()
    %cst_131 = arith.constant dense<0.000000e+00> : vector<16x16xf32>
    %194 = tpu.matmul %191, %192, %cst_131 {dimension_numbers = #tpu.dot_dimension_numbers<[1], [1], [0], [0], [0, 0, 1, 0], [], []>} : vector<16x8xf32>, vector<16x8xf32>, vector<16x16xf32> -> vector<16x16xf32>
    "tpu.trace_stop"() : () -> ()
    %cst_132 = arith.constant 0.353553385 : f32
    %195 = vector.broadcast %cst_132 : f32 to vector<16x16xf32>
    %196 = arith.mulf %194, %195 : vector<16x16xf32>
    %cst_133 = arith.constant dense<0xFF800000> : vector<16xf32>
    %197 = vector.multi_reduction <maximumf>, %196, %cst_133 [1] : vector<16x16xf32> to vector<16xf32>
    %198 = vector.shape_cast %197 : vector<16xf32> to vector<16x1xf32>
    %199 = vector.broadcast %198 : vector<16x1xf32> to vector<16x16xf32>
    %200 = arith.subf %196, %199 : vector<16x16xf32>
    %201 = math.exp %200 : vector<16x16xf32>
    %cst_134 = arith.constant dense<0.000000e+00> : vector<16xf32>
    %202 = vector.multi_reduction <add>, %201, %cst_134 [1] : vector<16x16xf32> to vector<16xf32>
    %203 = vector.shape_cast %202 : vector<16xf32> to vector<16x1xf32>
    %204 = vector.broadcast %203 : vector<16x1xf32> to vector<16x16xf32>
    %205 = arith.divf %201, %204 : vector<16x16xf32>
    "tpu.trace_start"() <{level = 10 : i32, message = "nm,md->nd"}> : () -> ()
    %cst_135 = arith.constant dense<0.000000e+00> : vector<16x8xf32>
    %206 = tpu.matmul %205, %193, %cst_135 {dimension_numbers = #tpu.dot_dimension_numbers<[1], [0], [0], [1], [0, 0, 1, 1], [], []>} : vector<16x16xf32>, vector<16x8xf32>, vector<16x8xf32> -> vector<16x8xf32>
    "tpu.trace_stop"() : () -> ()
    %c16_136 = arith.constant 16 : index
    %c24_137 = arith.constant 24 : index
    %207 = vector.load %arg7[%c16_136, %c24_137] : memref<32x64xf32, #tpu.memory_space<vmem>>, vector<16x8xf32>
    tpu.vector_store %arg7[%c16_136, %c24_137], %206 {strides = array<i32>} : memref<32x64xf32, #tpu.memory_space<vmem>>, vector<16x8xf32>,
    %c16_138 = arith.constant 16 : index
    %c32_139 = arith.constant 32 : index
    %208 = vector.load %arg6[%c16_138, %c32_139] : memref<32x192xf32, #tpu.memory_space<vmem>>, vector<16x8xf32>
    %c16_140 = arith.constant 16 : index
    %c96_141 = arith.constant 96 : index
    %209 = vector.load %arg6[%c16_140, %c96_141] : memref<32x192xf32, #tpu.memory_space<vmem>>, vector<16x8xf32>
    %c16_142 = arith.constant 16 : index
    %c160_143 = arith.constant 160 : index
    %210 = vector.load %arg6[%c16_142, %c160_143] : memref<32x192xf32, #tpu.memory_space<vmem>>, vector<16x8xf32>
    "tpu.trace_start"() <{level = 10 : i32, message = "nd,md->nm"}> : () -> ()
    %cst_144 = arith.constant dense<0.000000e+00> : vector<16x16xf32>
    %211 = tpu.matmul %208, %209, %cst_144 {dimension_numbers = #tpu.dot_dimension_numbers<[1], [1], [0], [0], [0, 0, 1, 0], [], []>} : vector<16x8xf32>, vector<16x8xf32>, vector<16x16xf32> -> vector<16x16xf32>
    "tpu.trace_stop"() : () -> ()
    %cst_145 = arith.constant 0.353553385 : f32
    %212 = vector.broadcast %cst_145 : f32 to vector<16x16xf32>
    %213 = arith.mulf %211, %212 : vector<16x16xf32>
    %cst_146 = arith.constant dense<0xFF800000> : vector<16xf32>
    %214 = vector.multi_reduction <maximumf>, %213, %cst_146 [1] : vector<16x16xf32> to vector<16xf32>
    %215 = vector.shape_cast %214 : vector<16xf32> to vector<16x1xf32>
    %216 = vector.broadcast %215 : vector<16x1xf32> to vector<16x16xf32>
    %217 = arith.subf %213, %216 : vector<16x16xf32>
    %218 = math.exp %217 : vector<16x16xf32>
    %cst_147 = arith.constant dense<0.000000e+00> : vector<16xf32>
    %219 = vector.multi_reduction <add>, %218, %cst_147 [1] : vector<16x16xf32> to vector<16xf32>
    %220 = vector.shape_cast %219 : vector<16xf32> to vector<16x1xf32>
    %221 = vector.broadcast %220 : vector<16x1xf32> to vector<16x16xf32>
    %222 = arith.divf %218, %221 : vector<16x16xf32>
    "tpu.trace_start"() <{level = 10 : i32, message = "nm,md->nd"}> : () -> ()
    %cst_148 = arith.constant dense<0.000000e+00> : vector<16x8xf32>
    %223 = tpu.matmul %222, %210, %cst_148 {dimension_numbers = #tpu.dot_dimension_numbers<[1], [0], [0], [1], [0, 0, 1, 1], [], []>} : vector<16x16xf32>, vector<16x8xf32>, vector<16x8xf32> -> vector<16x8xf32>
    "tpu.trace_stop"() : () -> ()
    %c16_149 = arith.constant 16 : index
    %c32_150 = arith.constant 32 : index
    %224 = vector.load %arg7[%c16_149, %c32_150] : memref<32x64xf32, #tpu.memory_space<vmem>>, vector<16x8xf32>
    tpu.vector_store %arg7[%c16_149, %c32_150], %223 {strides = array<i32>} : memref<32x64xf32, #tpu.memory_space<vmem>>, vector<16x8xf32>,
    %c16_151 = arith.constant 16 : index
    %c40_152 = arith.constant 40 : index
    %225 = vector.load %arg6[%c16_151, %c40_152] : memref<32x192xf32, #tpu.memory_space<vmem>>, vector<16x8xf32>
    %c16_153 = arith.constant 16 : index
    %c104_154 = arith.constant 104 : index
    %226 = vector.load %arg6[%c16_153, %c104_154] : memref<32x192xf32, #tpu.memory_space<vmem>>, vector<16x8xf32>
    %c16_155 = arith.constant 16 : index
    %c168_156 = arith.constant 168 : index
    %227 = vector.load %arg6[%c16_155, %c168_156] : memref<32x192xf32, #tpu.memory_space<vmem>>, vector<16x8xf32>
    "tpu.trace_start"() <{level = 10 : i32, message = "nd,md->nm"}> : () -> ()
    %cst_157 = arith.constant dense<0.000000e+00> : vector<16x16xf32>
    %228 = tpu.matmul %225, %226, %cst_157 {dimension_numbers = #tpu.dot_dimension_numbers<[1], [1], [0], [0], [0, 0, 1, 0], [], []>} : vector<16x8xf32>, vector<16x8xf32>, vector<16x16xf32> -> vector<16x16xf32>
    "tpu.trace_stop"() : () -> ()
    %cst_158 = arith.constant 0.353553385 : f32
    %229 = vector.broadcast %cst_158 : f32 to vector<16x16xf32>
    %230 = arith.mulf %228, %229 : vector<16x16xf32>
    %cst_159 = arith.constant dense<0xFF800000> : vector<16xf32>
    %231 = vector.multi_reduction <maximumf>, %230, %cst_159 [1] : vector<16x16xf32> to vector<16xf32>
    %232 = vector.shape_cast %231 : vector<16xf32> to vector<16x1xf32>
    %233 = vector.broadcast %232 : vector<16x1xf32> to vector<16x16xf32>
    %234 = arith.subf %230, %233 : vector<16x16xf32>
    %235 = math.exp %234 : vector<16x16xf32>
    %cst_160 = arith.constant dense<0.000000e+00> : vector<16xf32>
    %236 = vector.multi_reduction <add>, %235, %cst_160 [1] : vector<16x16xf32> to vector<16xf32>
    %237 = vector.shape_cast %236 : vector<16xf32> to vector<16x1xf32>
    %238 = vector.broadcast %237 : vector<16x1xf32> to vector<16x16xf32>
    %239 = arith.divf %235, %238 : vector<16x16xf32>
    "tpu.trace_start"() <{level = 10 : i32, message = "nm,md->nd"}> : () -> ()
    %cst_161 = arith.constant dense<0.000000e+00> : vector<16x8xf32>
    %240 = tpu.matmul %239, %227, %cst_161 {dimension_numbers = #tpu.dot_dimension_numbers<[1], [0], [0], [1], [0, 0, 1, 1], [], []>} : vector<16x16xf32>, vector<16x8xf32>, vector<16x8xf32> -> vector<16x8xf32>
    "tpu.trace_stop"() : () -> ()
    %c16_162 = arith.constant 16 : index
    %c40_163 = arith.constant 40 : index
    %241 = vector.load %arg7[%c16_162, %c40_163] : memref<32x64xf32, #tpu.memory_space<vmem>>, vector<16x8xf32>
    tpu.vector_store %arg7[%c16_162, %c40_163], %240 {strides = array<i32>} : memref<32x64xf32, #tpu.memory_space<vmem>>, vector<16x8xf32>,
    %c16_164 = arith.constant 16 : index
    %c48_165 = arith.constant 48 : index
    %242 = vector.load %arg6[%c16_164, %c48_165] : memref<32x192xf32, #tpu.memory_space<vmem>>, vector<16x8xf32>
    %c16_166 = arith.constant 16 : index
    %c112_167 = arith.constant 112 : index
    %243 = vector.load %arg6[%c16_166, %c112_167] : memref<32x192xf32, #tpu.memory_space<vmem>>, vector<16x8xf32>
    %c16_168 = arith.constant 16 : index
    %c176_169 = arith.constant 176 : index
    %244 = vector.load %arg6[%c16_168, %c176_169] : memref<32x192xf32, #tpu.memory_space<vmem>>, vector<16x8xf32>
    "tpu.trace_start"() <{level = 10 : i32, message = "nd,md->nm"}> : () -> ()
    %cst_170 = arith.constant dense<0.000000e+00> : vector<16x16xf32>
    %245 = tpu.matmul %242, %243, %cst_170 {dimension_numbers = #tpu.dot_dimension_numbers<[1], [1], [0], [0], [0, 0, 1, 0], [], []>} : vector<16x8xf32>, vector<16x8xf32>, vector<16x16xf32> -> vector<16x16xf32>
    "tpu.trace_stop"() : () -> ()
    %cst_171 = arith.constant 0.353553385 : f32
    %246 = vector.broadcast %cst_171 : f32 to vector<16x16xf32>
    %247 = arith.mulf %245, %246 : vector<16x16xf32>
    %cst_172 = arith.constant dense<0xFF800000> : vector<16xf32>
    %248 = vector.multi_reduction <maximumf>, %247, %cst_172 [1] : vector<16x16xf32> to vector<16xf32>
    %249 = vector.shape_cast %248 : vector<16xf32> to vector<16x1xf32>
    %250 = vector.broadcast %249 : vector<16x1xf32> to vector<16x16xf32>
    %251 = arith.subf %247, %250 : vector<16x16xf32>
    %252 = math.exp %251 : vector<16x16xf32>
    %cst_173 = arith.constant dense<0.000000e+00> : vector<16xf32>
    %253 = vector.multi_reduction <add>, %252, %cst_173 [1] : vector<16x16xf32> to vector<16xf32>
    %254 = vector.shape_cast %253 : vector<16xf32> to vector<16x1xf32>
    %255 = vector.broadcast %254 : vector<16x1xf32> to vector<16x16xf32>
    %256 = arith.divf %252, %255 : vector<16x16xf32>
    "tpu.trace_start"() <{level = 10 : i32, message = "nm,md->nd"}> : () -> ()
    %cst_174 = arith.constant dense<0.000000e+00> : vector<16x8xf32>
    %257 = tpu.matmul %256, %244, %cst_174 {dimension_numbers = #tpu.dot_dimension_numbers<[1], [0], [0], [1], [0, 0, 1, 1], [], []>} : vector<16x16xf32>, vector<16x8xf32>, vector<16x8xf32> -> vector<16x8xf32>
    "tpu.trace_stop"() : () -> ()
    %c16_175 = arith.constant 16 : index
    %c48_176 = arith.constant 48 : index
    %258 = vector.load %arg7[%c16_175, %c48_176] : memref<32x64xf32, #tpu.memory_space<vmem>>, vector<16x8xf32>
    tpu.vector_store %arg7[%c16_175, %c48_176], %257 {strides = array<i32>} : memref<32x64xf32, #tpu.memory_space<vmem>>, vector<16x8xf32>,
    %c16_177 = arith.constant 16 : index
    %c56_178 = arith.constant 56 : index
    %259 = vector.load %arg6[%c16_177, %c56_178] : memref<32x192xf32, #tpu.memory_space<vmem>>, vector<16x8xf32>
    %c16_179 = arith.constant 16 : index
    %c120_180 = arith.constant 120 : index
    %260 = vector.load %arg6[%c16_179, %c120_180] : memref<32x192xf32, #tpu.memory_space<vmem>>, vector<16x8xf32>
    %c16_181 = arith.constant 16 : index
    %c184_182 = arith.constant 184 : index
    %261 = vector.load %arg6[%c16_181, %c184_182] : memref<32x192xf32, #tpu.memory_space<vmem>>, vector<16x8xf32>
    "tpu.trace_start"() <{level = 10 : i32, message = "nd,md->nm"}> : () -> ()
    %cst_183 = arith.constant dense<0.000000e+00> : vector<16x16xf32>
    %262 = tpu.matmul %259, %260, %cst_183 {dimension_numbers = #tpu.dot_dimension_numbers<[1], [1], [0], [0], [0, 0, 1, 0], [], []>} : vector<16x8xf32>, vector<16x8xf32>, vector<16x16xf32> -> vector<16x16xf32>
    "tpu.trace_stop"() : () -> ()
    %cst_184 = arith.constant 0.353553385 : f32
    %263 = vector.broadcast %cst_184 : f32 to vector<16x16xf32>
    %264 = arith.mulf %262, %263 : vector<16x16xf32>
    %cst_185 = arith.constant dense<0xFF800000> : vector<16xf32>
    %265 = vector.multi_reduction <maximumf>, %264, %cst_185 [1] : vector<16x16xf32> to vector<16xf32>
    %266 = vector.shape_cast %265 : vector<16xf32> to vector<16x1xf32>
    %267 = vector.broadcast %266 : vector<16x1xf32> to vector<16x16xf32>
    %268 = arith.subf %264, %267 : vector<16x16xf32>
    %269 = math.exp %268 : vector<16x16xf32>
    %cst_186 = arith.constant dense<0.000000e+00> : vector<16xf32>
    %270 = vector.multi_reduction <add>, %269, %cst_186 [1] : vector<16x16xf32> to vector<16xf32>
    %271 = vector.shape_cast %270 : vector<16xf32> to vector<16x1xf32>
    %272 = vector.broadcast %271 : vector<16x1xf32> to vector<16x16xf32>
    %273 = arith.divf %269, %272 : vector<16x16xf32>
    "tpu.trace_start"() <{level = 10 : i32, message = "nm,md->nd"}> : () -> ()
    %cst_187 = arith.constant dense<0.000000e+00> : vector<16x8xf32>
    %274 = tpu.matmul %273, %261, %cst_187 {dimension_numbers = #tpu.dot_dimension_numbers<[1], [0], [0], [1], [0, 0, 1, 1], [], []>} : vector<16x16xf32>, vector<16x8xf32>, vector<16x8xf32> -> vector<16x8xf32>
    "tpu.trace_stop"() : () -> ()
    %c16_188 = arith.constant 16 : index
    %c56_189 = arith.constant 56 : index
    %275 = vector.load %arg7[%c16_188, %c56_189] : memref<32x64xf32, #tpu.memory_space<vmem>>, vector<16x8xf32>
    tpu.vector_store %arg7[%c16_188, %c56_189], %274 {strides = array<i32>} : memref<32x64xf32, #tpu.memory_space<vmem>>, vector<16x8xf32>,
    %c0_190 = arith.constant 0 : index
    %c0_191 = arith.constant 0 : index
    %276 = vector.load %arg7[%c0_190, %c0_191] : memref<32x64xf32, #tpu.memory_space<vmem>>, vector<32x64xf32>
    %277 = arith.truncf %276 : vector<32x64xf32> to vector<32x64xbf16>
    %c0_192 = arith.constant 0 : index
    %c0_193 = arith.constant 0 : index
    %278 = vector.load %arg3[%c0_192, %c0_193] : memref<64x64xbf16, #tpu.memory_space<vmem>>, vector<64x64xbf16>
    %cst_194 = arith.constant dense<0.000000e+00> : vector<32x64xf32>
    %279 = tpu.matmul %277, %278, %cst_194 {dimension_numbers = #tpu.dot_dimension_numbers<[1], [0], [0], [1], [0, 0, 1, 1], [], []>} : vector<32x64xbf16>, vector<64x64xbf16>, vector<32x64xf32> -> vector<32x64xf32>
    %c0_195 = arith.constant 0 : index
    %c0_196 = arith.constant 0 : index
    %280 = vector.load %arg4[%c0_195, %c0_196] : memref<1x64xf32, #tpu.memory_space<vmem>>, vector<1x64xf32>
    %281 = vector.broadcast %280 : vector<1x64xf32> to vector<32x64xf32>
    %282 = arith.addf %279, %281 : vector<32x64xf32>
    %c0_197 = arith.constant 0 : index
    %c0_198 = arith.constant 0 : index
    %283 = vector.load %arg5[%c0_197, %c0_198] : memref<32x64xf32, #tpu.memory_space<vmem>>, vector<32x64xf32>
    tpu.vector_store %arg5[%c0_197, %c0_198], %282 {strides = array<i32>} : memref<32x64xf32, #tpu.memory_space<vmem>>, vector<32x64xf32>,
    return
  }
  func.func @transform_0(%arg0: i32) -> (i32, i32) {
    %c0_i32 = arith.constant 0 : i32
    %c0_i32_0 = arith.constant 0 : i32
    return %arg0, %c0_i32 : i32, i32
  }
  func.func @transform_1(%arg0: i32) -> (i32, i32) {
    %c0_i32 = arith.constant 0 : i32
    %c0_i32_0 = arith.constant 0 : i32
    %c0_i32_1 = arith.constant 0 : i32
    return %c0_i32, %c0_i32_0 : i32, i32
  }
  func.func @transform_2(%arg0: i32) -> (i32, i32) {
    %c0_i32 = arith.constant 0 : i32
    %c0_i32_0 = arith.constant 0 : i32
    %c0_i32_1 = arith.constant 0 : i32
    return %c0_i32, %c0_i32_0 : i32, i32
  }
  func.func @transform_3(%arg0: i32) -> (i32, i32) {
    %c0_i32 = arith.constant 0 : i32
    %c0_i32_0 = arith.constant 0 : i32
    %c0_i32_1 = arith.constant 0 : i32
    return %c0_i32, %c0_i32_0 : i32, i32
  }
  func.func @transform_4(%arg0: i32) -> (i32, i32) {
    %c0_i32 = arith.constant 0 : i32
    %c0_i32_0 = arith.constant 0 : i32
    return %arg0, %c0_i32 : i32, i32
  }
}

</mosaic_0001>

<llo_original>
// kernel: tpu_custom_call.1
$region0: #{tpu_custom_call.1}
  #allocation0 [shape = 'u32[]', space=smem, size = 0x4, offset = 0x4, fixed_abs, tag = 'smem constant byte address 0x4 - core index']
  #allocation1 [shape = 'u32[72,128]{1,0:T(1,128)}', space=vmem, size = 0x9000, scoped, tag = 'internal scratch']
  #allocation2 [shape = 'f32[32,192]{1,0:T(8,128)}', space=vmem, size = 0x8000, scoped, tag = 'scratch operand']
  #allocation3 [shape = 'f32[32,64]{1,0:T(8,128)}', space=vmem, size = 0x4000, scoped, tag = 'scratch operand']
  %s0 = inlined_call_operand.hbm [shape: bf16[32,64], index: 0, kind: input, shape index: {}]
  %s1 = inlined_call_operand.hbm [shape: bf16[64,192], index: 1, kind: input, shape index: {}]
  %s2 = inlined_call_operand.hbm [shape: bf16[64,64], index: 2, kind: input, shape index: {}]
  %s3 = inlined_call_operand.vmem [shape: f32[1,64], index: 3, kind: input, shape index: {}]
  %s4 = inlined_call_operand.hbm [shape: f32[32,64], index: 4, kind: output, shape index: {}]
  %s5 = sld [smem:[#allocation0]]
  $region38: #{tpu_custom_call.1} parent=0
    _
  %s7 = ssub.s32 1, %s5
  %s8 = scalar_select 0, %s7, %s5
  $region1: #{tpu_custom_call.1} parent=0
    #allocation4 [shape = 'u8[8192]{0}', space=vmem, size = 0x2000, scoped, tag = 'input window, operand 0, single buffered']
    #allocation5 [shape = 's32[1]{0}', space=sflag, size = 0x4, scoped, tag = 'scoped memory for tpu_custom_call.1']
    #allocation6 [shape = 's32[1]{0}', space=sflag, size = 0x4, scoped, tag = 'scoped memory for tpu_custom_call.1']
    #allocation7 [shape = 'u8[32768]{0}', space=vmem, size = 0x8000, scoped, tag = 'input window, operand 1, single buffered']
    #allocation8 [shape = 's32[1]{0}', space=sflag, size = 0x4, scoped, tag = 'scoped memory for tpu_custom_call.1']
    #allocation9 [shape = 'u8[16384]{0}', space=vmem, size = 0x4000, scoped, tag = 'input window, operand 2, single buffered']
    #allocation10 [shape = 'u8[16384]{0}', space=vmem, size = 0x4000, scoped, tag = 'output window, operand 0, single buffered']
    %9 = vsyncpa [#allocation5], 0
    %10 = vsyncpa [#allocation8], 0
    %11 = vsyncpa [#allocation6], 0
    // Predicated region
    $region2: #{tpu_custom_call.1} parent=1 // pred_check
      _
    $region3: #{tpu_custom_call.1} parent=1 // pred_check_branch
      %13 = sbr.rel (0) target = $region5
    $region4: #{tpu_custom_call.1} parent=1 // pred_region
      %15 = vsyncadd [#allocation5], 0
      %s16 = sshll.u32 %s0, 4
      %s17 = int_to_ptr.hbm [resolvable:$true] %s16
      %s18 = sshll.u32 [#allocation4], 4
      %s19 = int_to_ptr.vmem [resolvable:$true] %s18
      %24 = dma.hbm_to_vmem [thread:$0]  %s17, 256, %s19, [#allocation5], 64, 64, 4
    $region5: #{tpu_custom_call.1} parent=1 // pred_fallthru
      _
    // Predicated region
    $region6: #{tpu_custom_call.1} parent=1 // pred_check
      _
    $region7: #{tpu_custom_call.1} parent=1 // pred_check_branch
      %26 = sbr.rel (0) target = $region9
    $region8: #{tpu_custom_call.1} parent=1 // pred_region
      %28 = vsyncadd [#allocation8], 0
      %s29 = sshll.u32 %s1, 4
      %s30 = int_to_ptr.hbm [resolvable:$true] %s29
      %s31 = sshll.u32 [#allocation7], 4
      %s32 = int_to_ptr.vmem [resolvable:$true] %s31
      %37 = dma.hbm_to_vmem [thread:$0]  %s30, 1024, %s32, [#allocation8], 128, 128, 8
    $region9: #{tpu_custom_call.1} parent=1 // pred_fallthru
      _
    // Predicated region
    $region10: #{tpu_custom_call.1} parent=1 // pred_check
      _
    $region11: #{tpu_custom_call.1} parent=1 // pred_check_branch
      %39 = sbr.rel (0) target = $region13
    $region12: #{tpu_custom_call.1} parent=1 // pred_region
      %41 = vsyncadd [#allocation8], 0
      %s42 = sshll.u32 %s2, 4
      %s43 = int_to_ptr.hbm [resolvable:$true] %s42
      %s44 = sshll.u32 [#allocation9], 4
      %s45 = int_to_ptr.vmem [resolvable:$true] %s44
      %50 = dma.hbm_to_vmem [thread:$0]  %s43, 512, %s45, [#allocation8], 64, 64, 4
    $region13: #{tpu_custom_call.1} parent=1 // pred_fallthru
      _
    // Predicated region
    $region14: #{tpu_custom_call.1} parent=1 // pred_check
      _
    $region15: #{tpu_custom_call.1} parent=1 // pred_check_branch
      %52 = sbr.rel (0) target = $region17
    $region16: #{tpu_custom_call.1} parent=1 // pred_region
      _
    $region17: #{tpu_custom_call.1} parent=1 // pred_fallthru
      _
    // Predicated region
    $region18: #{tpu_custom_call.1} parent=1 // pred_check
      _
    $region19: #{tpu_custom_call.1} parent=1 // pred_check_branch
      %54 = sbr.rel (0) target = $region21
    $region20: #{tpu_custom_call.1} parent=1 // pred_region
      %56 = dma.done [#allocation5], 256
    $region21: #{tpu_custom_call.1} parent=1 // pred_fallthru
      _
    // Predicated region
    $region22: #{tpu_custom_call.1} parent=1 // pred_check
      _
    $region23: #{tpu_custom_call.1} parent=1 // pred_check_branch
      %58 = sbr.rel (0) target = $region25
    $region24: #{tpu_custom_call.1} parent=1 // pred_region
      %60 = dma.done [#allocation8], 1024
    $region25: #{tpu_custom_call.1} parent=1 // pred_fallthru
      _
    // Predicated region
    $region26: #{tpu_custom_call.1} parent=1 // pred_check
      _
    $region27: #{tpu_custom_call.1} parent=1 // pred_check_branch
      %62 = sbr.rel (0) target = $region29
    $region28: #{tpu_custom_call.1} parent=1 // pred_region
      %64 = dma.done [#allocation8], 512
    $region29: #{tpu_custom_call.1} parent=1 // pred_fallthru
      _
    %v66 = vld [vmem:[#allocation4] sm:$0xf]
    %v67 = vld [vmem:[#allocation4 + $0x4] sm:$0xf]
    %v68 = vld [vmem:[#allocation4 + $0x8] sm:$0xf]
    %v69 = vld [vmem:[#allocation4 + $0xc] sm:$0xf]
    %v70 = vld [vmem:[#allocation7] sm:$0xff]
    %v71 = vld [vmem:[#allocation7 + $0x8] sm:$0xff]
    %v72 = vld [vmem:[#allocation7 + $0x10] sm:$0xff]
    %v73 = vld [vmem:[#allocation7 + $0x18] sm:$0xff]
    %v74 = vld [vmem:[#allocation7 + $0x20] sm:$0xff]
    %v75 = vld [vmem:[#allocation7 + $0x28] sm:$0xff]
    %v76 = vld [vmem:[#allocation7 + $0x30] sm:$0xff]
    %v77 = vld [vmem:[#allocation7 + $0x38] sm:$0xff]
    %v82 = vunpack.c.l.b16 %v66
    %v83 = vunpack.c.l.b16 %v67
    %v84 = vunpack.c.l.b16 %v68
    %v85 = vunpack.c.l.b16 %v69
    %v86 = vpack.c.b16 %v83, %v82
    %v87 = vpack.c.b16 %v85, %v84
    %v96 = vunpack.c.l.b16 %v70
    %v97 = vunpack.c.h.b16 %v70
    %v98 = vunpack.c.l.b16 %v71
    %v99 = vunpack.c.h.b16 %v71
    %v100 = vunpack.c.l.b16 %v72
    %v101 = vunpack.c.h.b16 %v72
    %v102 = vunpack.c.l.b16 %v73
    %v103 = vunpack.c.h.b16 %v73
    %v104 = vunpack.c.l.b16 %v74
    %v105 = vunpack.c.h.b16 %v74
    %v106 = vunpack.c.l.b16 %v75
    %v107 = vunpack.c.h.b16 %v75
    %v108 = vunpack.c.l.b16 %v76
    %v109 = vunpack.c.h.b16 %v76
    %v110 = vunpack.c.l.b16 %v77
    %v111 = vunpack.c.h.b16 %v77
    %v112 = vpack.c.b16 %v98, %v96
    %v113 = vpack.c.b16 %v99, %v97
    %v114 = vpack.c.b16 %v102, %v100
    %v115 = vpack.c.b16 %v103, %v101
    %v116 = vpack.c.b16 %v106, %v104
    %v117 = vpack.c.b16 %v107, %v105
    %v118 = vpack.c.b16 %v110, %v108
    %v119 = vpack.c.b16 %v111, %v109
    %vm128 = vcmask 523264
    %v130 = vsel %vm128, %v86, 0
    %v133 = vsel %vm128, %v87, 0
    %135 = vmatpush.bf16.msra.mxu0 0
    %136 = vmatpush.bf16.msra.mxu0 0
    %137 = vmatpush.bf16.msra.mxu0 0
    %138 = vmatpush.bf16.msra.mxu0 0
    %139 = vmatpush.bf16.msra.mxu0 %v118
    %140 = vmatpush.bf16.msra.mxu0 %v116
    %141 = vmatpush.bf16.msra.mxu0 %v114
    %142 = vmatpush.bf16.msra.mxu0 %v112
    %143 = vmatmul.bf16.gmra.mxu0 %v130
    %v144 = vpop.f32.mrf.mxu0
    %v145 = vadd.f32 0.0, %v144
    %v146 = vpop.f32.mrf.mxu0
    %v147 = vadd.f32 0.0, %v146
    %148 = vmatmul.bf16.gmra.mxu0 %v133
    %v149 = vpop.f32.mrf.mxu0
    %v150 = vadd.f32 0.0, %v149
    %v151 = vpop.f32.mrf.mxu0
    %v152 = vadd.f32 0.0, %v151
    %153 = vdwg.mxu0
    %154 = vmatpush.bf16.msra.mxu0 0
    %155 = vmatpush.bf16.msra.mxu0 0
    %156 = vmatpush.bf16.msra.mxu0 0
    %157 = vmatpush.bf16.msra.mxu0 0
    %158 = vmatpush.bf16.msra.mxu0 %v119
    %159 = vmatpush.bf16.msra.mxu0 %v117
    %160 = vmatpush.bf16.msra.mxu0 %v115
    %161 = vmatpush.bf16.msra.mxu0 %v113
    %162 = vmatmul.bf16.gmra.mxu0 %v130
    %v163 = vpop.f32.mrf.mxu0
    %v164 = vadd.f32 0.0, %v163
    %v165 = vpop.f32.mrf.mxu0
    %v166 = vadd.f32 0.0, %v165
    %167 = vmatmul.bf16.gmra.mxu0 %v133
    %v168 = vpop.f32.mrf.mxu0
    %v169 = vadd.f32 0.0, %v168
    %v170 = vpop.f32.mrf.mxu0
    %v171 = vadd.f32 0.0, %v170
    %172 = vdwg.mxu0
    %173 = vst [vmem:[#allocation2] sm:$0xff] %v145
    %174 = vst.msk [vmem:[#allocation2 + $0x8] sm:$0xff] %vm128, %v164
    %175 = vst [vmem:[#allocation2 + $0x10] sm:$0xff] %v147
    %176 = vst.msk [vmem:[#allocation2 + $0x18] sm:$0xff] %vm128, %v166
    %177 = vst [vmem:[#allocation2 + $0x20] sm:$0xff] %v150
    %178 = vst.msk [vmem:[#allocation2 + $0x28] sm:$0xff] %vm128, %v169
    %179 = vst [vmem:[#allocation2 + $0x30] sm:$0xff] %v152
    %180 = vst.msk [vmem:[#allocation2 + $0x38] sm:$0xff] %vm128, %v171
    %v181 = vld [vmem:[#allocation2] sm:$0xff]
    %v182 = vld [vmem:[#allocation2 + $0x10] sm:$0xff]
    %v183 = vld [vmem:[#allocation2 + $0x8] sm:$0xff]
    %v184 = vld [vmem:[#allocation2 + $0x18] sm:$0xff]
    %187 = vrot.lane.b32.xlu0 %v181, 64
    %v188 = vpop.permute.xlu0 %187
    %189 = vrot.lane.b32.xlu0 %v182, 64
    %v190 = vpop.permute.xlu0 %189
    %vm191 = vcmask 64512
    %v192 = vsel %vm191, %v181, 0
    %v194 = vsel %vm191, %v182, 0
    %v196 = vsel %vm191, %v188, 0
    %v198 = vsel %vm191, %v190, 0
    %200 = vmatpush.xpose.msra.mxu0 0.0
    %201 = vmatpush.xpose.msra.mxu0 0.0
    %202 = vmatpush.xpose.msra.mxu0 0.0
    %203 = vmatpush.xpose.msra.mxu0 0.0
    %204 = vmatpush.xpose.msra.mxu0 0.0
    %205 = vmatpush.xpose.msra.mxu0 0.0
    %206 = vmatpush.xpose.msra.mxu0 0.0
    %207 = vmatpush.xpose.msra.mxu0 0.0
    %208 = vmatpush.xpose.msra.mxu0 0.0
    %209 = vmatpush.xpose.msra.mxu0 0.0
    %210 = vmatpush.xpose.msra.mxu0 0.0
    %211 = vmatpush.xpose.msra.mxu0 0.0
    %212 = vmatpush.xpose.msra.mxu0 0.0
    %213 = vmatpush.xpose.msra.mxu0 0.0
    %214 = vmatpush.xpose.msra.mxu0 %v198
    %215 = vmatpush.xpose.msra.mxu0 %v196
    %216 = vmatmul.f32.gmra.mxu0 %v192
    %v217 = vpop.f32.mrf.mxu0
    %v218 = vadd.f32 0.0, %v217
    %219 = vmatmul.f32.gmra.mxu0 %v194
    %v220 = vpop.f32.mrf.mxu0
    %v221 = vadd.f32 0.0, %v220
    %222 = vdwg.mxu0
    %v223 = vmul.f32 %v218, 0.35355338
    %v224 = vmul.f32 %v221, 0.35355338
    %vm225 = vcmask 130048
    %v226 = vsel %vm225, %v223, -inf
    %227 = vmax.xlane.f32.xlu0 %v226
    %v228 = vpop.xlane.xlu0 %227
    %v229 = vsel %vm225, %v224, -inf
    %230 = vmax.xlane.f32.xlu0 %v229
    %v231 = vpop.xlane.xlu0 %230
    %v232 = vsub.f32 %v223, %v228
    %v233 = vsub.f32 %v224, %v231
    %v234 = vmul.f32 %v232, 1.442695
    %v235 = vpow.pop %v234
    %v236 = vmul.f32 %v233, 1.442695
    %v237 = vpow.pop %v236
    %v238 = vsel %vm225, %v235, 0.0
    %239 = vadd.xlane.f32.xlu0 %v238
    %v240 = vpop.xlane.xlu0 %239
    %v241 = vsel %vm225, %v237, 0.0
    %242 = vadd.xlane.f32.xlu0 %v241
    %v243 = vpop.xlane.xlu0 %242
    %v244 = vrcp.pop %v240
    %v245 = vmul.f32 %v240, %v244
    %v246 = vsub.f32 1.0, %v245
    %v247 = vmul.f32 %v244, %v246
    %v248 = vadd.f32 %v244, %v247
    %vm249 = vweird.f32 %v240
    %vm250 = vweird.f32 %v244
    %vm251 = vmor %vm249, %vm250
    %v252 = vsel %vm251, %v244, %v248
    %v253 = vand.u32 2147483647, %v240
    %vm254 = vcmp.eq.f32.partialorder %v253, 8.507059e+37
    %v255 = vand.u32 %v240, 2147483648
    %v256 = vor.u32 1.1754944e-38, %v255
    %v257 = vsel %vm254, %v256, %v252
    %v258 = vmul.f32 %v235, %v257
    %v259 = vrcp.pop %v243
    %v260 = vmul.f32 %v243, %v259
    %v261 = vsub.f32 1.0, %v260
    %v262 = vmul.f32 %v259, %v261
    %v263 = vadd.f32 %v259, %v262
    %vm264 = vweird.f32 %v243
    %vm265 = vweird.f32 %v259
    %vm266 = vmor %vm264, %vm265
    %v267 = vsel %vm266, %v259, %v263
    %v268 = vand.u32 2147483647, %v243
    %vm269 = vcmp.eq.f32.partialorder %v268, 8.507059e+37
    %v270 = vand.u32 %v243, 2147483648
    %v271 = vor.u32 1.1754944e-38, %v270
    %v272 = vsel %vm269, %v271, %v267
    %v273 = vmul.f32 %v237, %v272
    %v275 = vsel %vm225, %v258, 0
    %v278 = vsel %vm225, %v273, 0
    %280 = vmatpush.msra.mxu0 0.0
    %281 = vmatpush.msra.mxu0 0.0
    %282 = vmatpush.msra.mxu0 0.0
    %283 = vmatpush.msra.mxu0 0.0
    %284 = vmatpush.msra.mxu0 0.0
    %285 = vmatpush.msra.mxu0 0.0
    %286 = vmatpush.msra.mxu0 0.0
    %287 = vmatpush.msra.mxu0 0.0
    %288 = vmatpush.msra.mxu0 0.0
    %289 = vmatpush.msra.mxu0 0.0
    %290 = vmatpush.msra.mxu0 0.0
    %291 = vmatpush.msra.mxu0 0.0
    %292 = vmatpush.msra.mxu0 0.0
    %293 = vmatpush.msra.mxu0 0.0
    %294 = vmatpush.msra.mxu0 %v184
    %295 = vmatpush.msra.mxu0 %v183
    %296 = vmatmul.f32.gmra.mxu0 %v275
    %v297 = vpop.f32.mrf.mxu0
    %v298 = vadd.f32 0.0, %v297
    %299 = vmatmul.f32.gmra.mxu0 %v278
    %v300 = vpop.f32.mrf.mxu0
    %v301 = vadd.f32 0.0, %v300
    %302 = vdwg.mxu0
    %303 = vst.msk [vmem:[#allocation3] sm:$0xff] %vm191, %v298
    %304 = vst.msk [vmem:[#allocation3 + $0x8] sm:$0xff] %vm191, %v301
    %v305 = vld [vmem:[#allocation2] sm:$0xff]
    %v306 = vld [vmem:[#allocation2 + $0x10] sm:$0xff]
    %v307 = vld [vmem:[#allocation2 + $0x8] sm:$0xff]
    %v308 = vld [vmem:[#allocation2 + $0x18] sm:$0xff]
    %311 = vrot.lane.b32.xlu0 %v305, 120
    %v312 = vpop.permute.xlu0 %311
    %313 = vrot.lane.b32.xlu0 %v306, 120
    %v314 = vpop.permute.xlu0 %313
    %315 = vrot.lane.b32.xlu0 %v305, 56
    %v316 = vpop.permute.xlu0 %315
    %317 = vrot.lane.b32.xlu0 %v306, 56
    %v318 = vpop.permute.xlu0 %317
    %v319 = vsel %vm191, %v312, 0
    %v321 = vsel %vm191, %v314, 0
    %v323 = vsel %vm191, %v316, 0
    %v325 = vsel %vm191, %v318, 0
    %327 = vmatpush.xpose.msra.mxu0 0.0
    %328 = vmatpush.xpose.msra.mxu0 0.0
    %329 = vmatpush.xpose.msra.mxu0 0.0
    %330 = vmatpush.xpose.msra.mxu0 0.0
    %331 = vmatpush.xpose.msra.mxu0 0.0
    %332 = vmatpush.xpose.msra.mxu0 0.0
    %333 = vmatpush.xpose.msra.mxu0 0.0
    %334 = vmatpush.xpose.msra.mxu0 0.0
    %335 = vmatpush.xpose.msra.mxu0 0.0
    %336 = vmatpush.xpose.msra.mxu0 0.0
    %337 = vmatpush.xpose.msra.mxu0 0.0
    %338 = vmatpush.xpose.msra.mxu0 0.0
    %339 = vmatpush.xpose.msra.mxu0 0.0
    %340 = vmatpush.xpose.msra.mxu0 0.0
    %341 = vmatpush.xpose.msra.mxu0 %v325
    %342 = vmatpush.xpose.msra.mxu0 %v323
    %343 = vmatmul.f32.gmra.mxu0 %v319
    %v344 = vpop.f32.mrf.mxu0
    %v345 = vadd.f32 0.0, %v344
    %346 = vmatmul.f32.gmra.mxu0 %v321
    %v347 = vpop.f32.mrf.mxu0
    %v348 = vadd.f32 0.0, %v347
    %349 = vdwg.mxu0
    %v350 = vmul.f32 %v345, 0.35355338
    %v351 = vmul.f32 %v348, 0.35355338
    %v352 = vsel %vm225, %v350, -inf
    %353 = vmax.xlane.f32.xlu0 %v352
    %v354 = vpop.xlane.xlu0 %353
    %v355 = vsel %vm225, %v351, -inf
    %356 = vmax.xlane.f32.xlu0 %v355
    %v357 = vpop.xlane.xlu0 %356
    %v358 = vsub.f32 %v350, %v354
    %v359 = vsub.f32 %v351, %v357
    %v360 = vmul.f32 %v358, 1.442695
    %v361 = vpow.pop %v360
    %v362 = vmul.f32 %v359, 1.442695
    %v363 = vpow.pop %v362
    %v364 = vsel %vm225, %v361, 0.0
    %365 = vadd.xlane.f32.xlu0 %v364
    %v366 = vpop.xlane.xlu0 %365
    %v367 = vsel %vm225, %v363, 0.0
    %368 = vadd.xlane.f32.xlu0 %v367
    %v369 = vpop.xlane.xlu0 %368
    %v370 = vrcp.pop %v366
    %v371 = vmul.f32 %v366, %v370
    %v372 = vsub.f32 1.0, %v371
    %v373 = vmul.f32 %v370, %v372
    %v374 = vadd.f32 %v370, %v373
    %vm375 = vweird.f32 %v366
    %vm376 = vweird.f32 %v370
    %vm377 = vmor %vm375, %vm376
    %v378 = vsel %vm377, %v370, %v374
    %v379 = vand.u32 2147483647, %v366
    %vm380 = vcmp.eq.f32.partialorder %v379, 8.507059e+37
    %v381 = vand.u32 %v366, 2147483648
    %v382 = vor.u32 1.1754944e-38, %v381
    %v383 = vsel %vm380, %v382, %v378
    %v384 = vmul.f32 %v361, %v383
    %v385 = vrcp.pop %v369
    %v386 = vmul.f32 %v369, %v385
    %v387 = vsub.f32 1.0, %v386
    %v388 = vmul.f32 %v385, %v387
    %v389 = vadd.f32 %v385, %v388
    %vm390 = vweird.f32 %v369
    %vm391 = vweird.f32 %v385
    %vm392 = vmor %vm390, %vm391
    %v393 = vsel %vm392, %v385, %v389
    %v394 = vand.u32 2147483647, %v369
    %vm395 = vcmp.eq.f32.partialorder %v394, 8.507059e+37
    %v396 = vand.u32 %v369, 2147483648
    %v397 = vor.u32 1.1754944e-38, %v396
    %v398 = vsel %vm395, %v397, %v393
    %v399 = vmul.f32 %v363, %v398
    %402 = vrot.lane.b32.xlu0 %v307, 120
    %v403 = vpop.permute.xlu0 %402
    %404 = vrot.lane.b32.xlu0 %v308, 120
    %v405 = vpop.permute.xlu0 %404
    %v409 = vsel %vm225, %v384, 0
    %v412 = vsel %vm225, %v399, 0
    %414 = vmatpush.msra.mxu0 0.0
    %415 = vmatpush.msra.mxu0 0.0
    %416 = vmatpush.msra.mxu0 0.0
    %417 = vmatpush.msra.mxu0 0.0
    %418 = vmatpush.msra.mxu0 0.0
    %419 = vmatpush.msra.mxu0 0.0
    %420 = vmatpush.msra.mxu0 0.0
    %421 = vmatpush.msra.mxu0 0.0
    %422 = vmatpush.msra.mxu0 0.0
    %423 = vmatpush.msra.mxu0 0.0
    %424 = vmatpush.msra.mxu0 0.0
    %425 = vmatpush.msra.mxu0 0.0
    %426 = vmatpush.msra.mxu0 0.0
    %427 = vmatpush.msra.mxu0 0.0
    %428 = vmatpush.msra.mxu0 %v405
    %429 = vmatpush.msra.mxu0 %v403
    %430 = vmatmul.f32.gmra.mxu0 %v409
    %v431 = vpop.f32.mrf.mxu0
    %v432 = vadd.f32 0.0, %v431
    %433 = vmatmul.f32.gmra.mxu0 %v412
    %v434 = vpop.f32.mrf.mxu0
    %v435 = vadd.f32 0.0, %v434
    %436 = vdwg.mxu0
    %439 = vrot.lane.b32.xlu0 %v432, 8
    %v440 = vpop.permute.xlu0 %439
    %441 = vrot.lane.b32.xlu0 %v435, 8
    %v442 = vpop.permute.xlu0 %441
    %vm445 = vcmask 130112
    %446 = vst.msk [vmem:[#allocation3] sm:$0xff] %vm445, %v440
    %447 = vst.msk [vmem:[#allocation3 + $0x8] sm:$0xff] %vm445, %v442
    %v448 = vld [vmem:[#allocation2] sm:$0xff]
    %v449 = vld [vmem:[#allocation2 + $0x10] sm:$0xff]
    %v450 = vld [vmem:[#allocation2 + $0x8] sm:$0xff]
    %v451 = vld [vmem:[#allocation2 + $0x18] sm:$0xff]
    %454 = vrot.lane.b32.xlu0 %v448, 112
    %v455 = vpop.permute.xlu0 %454
    %456 = vrot.lane.b32.xlu0 %v449, 112
    %v457 = vpop.permute.xlu0 %456
    %458 = vrot.lane.b32.xlu0 %v448, 48
    %v459 = vpop.permute.xlu0 %458
    %460 = vrot.lane.b32.xlu0 %v449, 48
    %v461 = vpop.permute.xlu0 %460
    %v462 = vsel %vm191, %v455, 0
    %v464 = vsel %vm191, %v457, 0
    %v466 = vsel %vm191, %v459, 0
    %v468 = vsel %vm191, %v461, 0
    %470 = vmatpush.xpose.msra.mxu0 0.0
    %471 = vmatpush.xpose.msra.mxu0 0.0
    %472 = vmatpush.xpose.msra.mxu0 0.0
    %473 = vmatpush.xpose.msra.mxu0 0.0
    %474 = vmatpush.xpose.msra.mxu0 0.0
    %475 = vmatpush.xpose.msra.mxu0 0.0
    %476 = vmatpush.xpose.msra.mxu0 0.0
    %477 = vmatpush.xpose.msra.mxu0 0.0
    %478 = vmatpush.xpose.msra.mxu0 0.0
    %479 = vmatpush.xpose.msra.mxu0 0.0
    %480 = vmatpush.xpose.msra.mxu0 0.0
    %481 = vmatpush.xpose.msra.mxu0 0.0
    %482 = vmatpush.xpose.msra.mxu0 0.0
    %483 = vmatpush.xpose.msra.mxu0 0.0
    %484 = vmatpush.xpose.msra.mxu0 %v468
    %485 = vmatpush.xpose.msra.mxu0 %v466
    %486 = vmatmul.f32.gmra.mxu0 %v462
    %v487 = vpop.f32.mrf.mxu0
    %v488 = vadd.f32 0.0, %v487
    %489 = vmatmul.f32.gmra.mxu0 %v464
    %v490 = vpop.f32.mrf.mxu0
    %v491 = vadd.f32 0.0, %v490
    %492 = vdwg.mxu0
    %v493 = vmul.f32 %v488, 0.35355338
    %v494 = vmul.f32 %v491, 0.35355338
    %v495 = vsel %vm225, %v493, -inf
    %496 = vmax.xlane.f32.xlu0 %v495
    %v497 = vpop.xlane.xlu0 %496
    %v498 = vsel %vm225, %v494, -inf
    %499 = vmax.xlane.f32.xlu0 %v498
    %v500 = vpop.xlane.xlu0 %499
    %v501 = vsub.f32 %v493, %v497
    %v502 = vsub.f32 %v494, %v500
    %v503 = vmul.f32 %v501, 1.442695
    %v504 = vpow.pop %v503
    %v505 = vmul.f32 %v502, 1.442695
    %v506 = vpow.pop %v505
    %v507 = vsel %vm225, %v504, 0.0
    %508 = vadd.xlane.f32.xlu0 %v507
    %v509 = vpop.xlane.xlu0 %508
    %v510 = vsel %vm225, %v506, 0.0
    %511 = vadd.xlane.f32.xlu0 %v510
    %v512 = vpop.xlane.xlu0 %511
    %v513 = vrcp.pop %v509
    %v514 = vmul.f32 %v509, %v513
    %v515 = vsub.f32 1.0, %v514
    %v516 = vmul.f32 %v513, %v515
    %v517 = vadd.f32 %v513, %v516
    %vm518 = vweird.f32 %v509
    %vm519 = vweird.f32 %v513
    %vm520 = vmor %vm518, %vm519
    %v521 = vsel %vm520, %v513, %v517
    %v522 = vand.u32 2147483647, %v509
    %vm523 = vcmp.eq.f32.partialorder %v522, 8.507059e+37
    %v524 = vand.u32 %v509, 2147483648
    %v525 = vor.u32 1.1754944e-38, %v524
    %v526 = vsel %vm523, %v525, %v521
    %v527 = vmul.f32 %v504, %v526
    %v528 = vrcp.pop %v512
    %v529 = vmul.f32 %v512, %v528
    %v530 = vsub.f32 1.0, %v529
    %v531 = vmul.f32 %v528, %v530
    %v532 = vadd.f32 %v528, %v531
    %vm533 = vweird.f32 %v512
    %vm534 = vweird.f32 %v528
    %vm535 = vmor %vm533, %vm534
    %v536 = vsel %vm535, %v528, %v532
    %v537 = vand.u32 2147483647, %v512
    %vm538 = vcmp.eq.f32.partialorder %v537, 8.507059e+37
    %v539 = vand.u32 %v512, 2147483648
    %v540 = vor.u32 1.1754944e-38, %v539
    %v541 = vsel %vm538, %v540, %v536
    %v542 = vmul.f32 %v506, %v541
    %545 = vrot.lane.b32.xlu0 %v450, 112
    %v546 = vpop.permute.xlu0 %545
    %547 = vrot.lane.b32.xlu0 %v451, 112
    %v548 = vpop.permute.xlu0 %547
    %v552 = vsel %vm225, %v527, 0
    %v555 = vsel %vm225, %v542, 0
    %557 = vmatpush.msra.mxu0 0.0
    %558 = vmatpush.msra.mxu0 0.0
    %559 = vmatpush.msra.mxu0 0.0
    %560 = vmatpush.msra.mxu0 0.0
    %561 = vmatpush.msra.mxu0 0.0
    %562 = vmatpush.msra.mxu0 0.0
    %563 = vmatpush.msra.mxu0 0.0
    %564 = vmatpush.msra.mxu0 0.0
    %565 = vmatpush.msra.mxu0 0.0
    %566 = vmatpush.msra.mxu0 0.0
    %567 = vmatpush.msra.mxu0 0.0
    %568 = vmatpush.msra.mxu0 0.0
    %569 = vmatpush.msra.mxu0 0.0
    %570 = vmatpush.msra.mxu0 0.0
    %571 = vmatpush.msra.mxu0 %v548
    %572 = vmatpush.msra.mxu0 %v546
    %573 = vmatmul.f32.gmra.mxu0 %v552
    %v574 = vpop.f32.mrf.mxu0
    %v575 = vadd.f32 0.0, %v574
    %576 = vmatmul.f32.gmra.mxu0 %v555
    %v577 = vpop.f32.mrf.mxu0
    %v578 = vadd.f32 0.0, %v577
    %579 = vdwg.mxu0
    %582 = vrot.lane.b32.xlu0 %v575, 16
    %v583 = vpop.permute.xlu0 %582
    %584 = vrot.lane.b32.xlu0 %v578, 16
    %v585 = vpop.permute.xlu0 %584
    %vm588 = vcmask 195712
    %589 = vst.msk [vmem:[#allocation3] sm:$0xff] %vm588, %v583
    %590 = vst.msk [vmem:[#allocation3 + $0x8] sm:$0xff] %vm588, %v585
    %v591 = vld [vmem:[#allocation2] sm:$0xff]
    %v592 = vld [vmem:[#allocation2 + $0x10] sm:$0xff]
    %v593 = vld [vmem:[#allocation2 + $0x8] sm:$0xff]
    %v594 = vld [vmem:[#allocation2 + $0x18] sm:$0xff]
    %597 = vrot.lane.b32.xlu0 %v591, 104
    %v598 = vpop.permute.xlu0 %597
    %599 = vrot.lane.b32.xlu0 %v592, 104
    %v600 = vpop.permute.xlu0 %599
    %601 = vrot.lane.b32.xlu0 %v591, 40
    %v602 = vpop.permute.xlu0 %601
    %603 = vrot.lane.b32.xlu0 %v592, 40
    %v604 = vpop.permute.xlu0 %603
    %v605 = vsel %vm191, %v598, 0
    %v607 = vsel %vm191, %v600, 0
    %v609 = vsel %vm191, %v602, 0
    %v611 = vsel %vm191, %v604, 0
    %613 = vmatpush.xpose.msra.mxu0 0.0
    %614 = vmatpush.xpose.msra.mxu0 0.0
    %615 = vmatpush.xpose.msra.mxu0 0.0
    %616 = vmatpush.xpose.msra.mxu0 0.0
    %617 = vmatpush.xpose.msra.mxu0 0.0
    %618 = vmatpush.xpose.msra.mxu0 0.0
    %619 = vmatpush.xpose.msra.mxu0 0.0
    %620 = vmatpush.xpose.msra.mxu0 0.0
    %621 = vmatpush.xpose.msra.mxu0 0.0
    %622 = vmatpush.xpose.msra.mxu0 0.0
    %623 = vmatpush.xpose.msra.mxu0 0.0
    %624 = vmatpush.xpose.msra.mxu0 0.0
    %625 = vmatpush.xpose.msra.mxu0 0.0
    %626 = vmatpush.xpose.msra.mxu0 0.0
    %627 = vmatpush.xpose.msra.mxu0 %v611
    %628 = vmatpush.xpose.msra.mxu0 %v609
    %629 = vmatmul.f32.gmra.mxu0 %v605
    %v630 = vpop.f32.mrf.mxu0
    %v631 = vadd.f32 0.0, %v630
    %632 = vmatmul.f32.gmra.mxu0 %v607
    %v633 = vpop.f32.mrf.mxu0
    %v634 = vadd.f32 0.0, %v633
    %635 = vdwg.mxu0
    %v636 = vmul.f32 %v631, 0.35355338
    %v637 = vmul.f32 %v634, 0.35355338
    %v638 = vsel %vm225, %v636, -inf
    %639 = vmax.xlane.f32.xlu0 %v638
    %v640 = vpop.xlane.xlu0 %639
    %v641 = vsel %vm225, %v637, -inf
    %642 = vmax.xlane.f32.xlu0 %v641
    %v643 = vpop.xlane.xlu0 %642
    %v644 = vsub.f32 %v636, %v640
    %v645 = vsub.f32 %v637, %v643
    %v646 = vmul.f32 %v644, 1.442695
    %v647 = vpow.pop %v646
    %v648 = vmul.f32 %v645, 1.442695
    %v649 = vpow.pop %v648
    %v650 = vsel %vm225, %v647, 0.0
    %651 = vadd.xlane.f32.xlu0 %v650
    %v652 = vpop.xlane.xlu0 %651
    %v653 = vsel %vm225, %v649, 0.0
    %654 = vadd.xlane.f32.xlu0 %v653
    %v655 = vpop.xlane.xlu0 %654
    %v656 = vrcp.pop %v652
    %v657 = vmul.f32 %v652, %v656
    %v658 = vsub.f32 1.0, %v657
    %v659 = vmul.f32 %v656, %v658
    %v660 = vadd.f32 %v656, %v659
    %vm661 = vweird.f32 %v652
    %vm662 = vweird.f32 %v656
    %vm663 = vmor %vm661, %vm662
    %v664 = vsel %vm663, %v656, %v660
    %v665 = vand.u32 2147483647, %v652
    %vm666 = vcmp.eq.f32.partialorder %v665, 8.507059e+37
    %v667 = vand.u32 %v652, 2147483648
    %v668 = vor.u32 1.1754944e-38, %v667
    %v669 = vsel %vm666, %v668, %v664
    %v670 = vmul.f32 %v647, %v669
    %v671 = vrcp.pop %v655
    %v672 = vmul.f32 %v655, %v671
    %v673 = vsub.f32 1.0, %v672
    %v674 = vmul.f32 %v671, %v673
    %v675 = vadd.f32 %v671, %v674
    %vm676 = vweird.f32 %v655
    %vm677 = vweird.f32 %v671
    %vm678 = vmor %vm676, %vm677
    %v679 = vsel %vm678, %v671, %v675
    %v680 = vand.u32 2147483647, %v655
    %vm681 = vcmp.eq.f32.partialorder %v680, 8.507059e+37
    %v682 = vand.u32 %v655, 2147483648
    %v683 = vor.u32 1.1754944e-38, %v682
    %v684 = vsel %vm681, %v683, %v679
    %v685 = vmul.f32 %v649, %v684
    %688 = vrot.lane.b32.xlu0 %v593, 104
    %v689 = vpop.permute.xlu0 %688
    %690 = vrot.lane.b32.xlu0 %v594, 104
    %v691 = vpop.permute.xlu0 %690
    %v695 = vsel %vm225, %v670, 0
    %v698 = vsel %vm225, %v685, 0
    %700 = vmatpush.msra.mxu0 0.0
    %701 = vmatpush.msra.mxu0 0.0
    %702 = vmatpush.msra.mxu0 0.0
    %703 = vmatpush.msra.mxu0 0.0
    %704 = vmatpush.msra.mxu0 0.0
    %705 = vmatpush.msra.mxu0 0.0
    %706 = vmatpush.msra.mxu0 0.0
    %707 = vmatpush.msra.mxu0 0.0
    %708 = vmatpush.msra.mxu0 0.0
    %709 = vmatpush.msra.mxu0 0.0
    %710 = vmatpush.msra.mxu0 0.0
    %711 = vmatpush.msra.mxu0 0.0
    %712 = vmatpush.msra.mxu0 0.0
    %713 = vmatpush.msra.mxu0 0.0
    %714 = vmatpush.msra.mxu0 %v691
    %715 = vmatpush.msra.mxu0 %v689
    %716 = vmatmul.f32.gmra.mxu0 %v695
    %v717 = vpop.f32.mrf.mxu0
    %v718 = vadd.f32 0.0, %v717
    %719 = vmatmul.f32.gmra.mxu0 %v698
    %v720 = vpop.f32.mrf.mxu0
    %v721 = vadd.f32 0.0, %v720
    %722 = vdwg.mxu0
    %725 = vrot.lane.b32.xlu0 %v718, 24
    %v726 = vpop.permute.xlu0 %725
    %727 = vrot.lane.b32.xlu0 %v721, 24
    %v728 = vpop.permute.xlu0 %727
    %vm731 = vcmask 261312
    %732 = vst.msk [vmem:[#allocation3] sm:$0xff] %vm731, %v726
    %733 = vst.msk [vmem:[#allocation3 + $0x8] sm:$0xff] %vm731, %v728
    %v734 = vld [vmem:[#allocation2] sm:$0xff]
    %v735 = vld [vmem:[#allocation2 + $0x10] sm:$0xff]
    %v736 = vld [vmem:[#allocation2 + $0x8] sm:$0xff]
    %v737 = vld [vmem:[#allocation2 + $0x18] sm:$0xff]
    %740 = vrot.lane.b32.xlu0 %v734, 96
    %v741 = vpop.permute.xlu0 %740
    %742 = vrot.lane.b32.xlu0 %v735, 96
    %v743 = vpop.permute.xlu0 %742
    %744 = vrot.lane.b32.xlu0 %v734, 32
    %v745 = vpop.permute.xlu0 %744
    %746 = vrot.lane.b32.xlu0 %v735, 32
    %v747 = vpop.permute.xlu0 %746
    %v748 = vsel %vm191, %v741, 0
    %v750 = vsel %vm191, %v743, 0
    %v752 = vsel %vm191, %v745, 0
    %v754 = vsel %vm191, %v747, 0
    %756 = vmatpush.xpose.msra.mxu0 0.0
    %757 = vmatpush.xpose.msra.mxu0 0.0
    %758 = vmatpush.xpose.msra.mxu0 0.0
    %759 = vmatpush.xpose.msra.mxu0 0.0
    %760 = vmatpush.xpose.msra.mxu0 0.0
    %761 = vmatpush.xpose.msra.mxu0 0.0
    %762 = vmatpush.xpose.msra.mxu0 0.0
    %763 = vmatpush.xpose.msra.mxu0 0.0
    %764 = vmatpush.xpose.msra.mxu0 0.0
    %765 = vmatpush.xpose.msra.mxu0 0.0
    %766 = vmatpush.xpose.msra.mxu0 0.0
    %767 = vmatpush.xpose.msra.mxu0 0.0
    %768 = vmatpush.xpose.msra.mxu0 0.0
    %769 = vmatpush.xpose.msra.mxu0 0.0
    %770 = vmatpush.xpose.msra.mxu0 %v754
    %771 = vmatpush.xpose.msra.mxu0 %v752
    %772 = vmatmul.f32.gmra.mxu0 %v748
    %v773 = vpop.f32.mrf.mxu0
    %v774 = vadd.f32 0.0, %v773
    %775 = vmatmul.f32.gmra.mxu0 %v750
    %v776 = vpop.f32.mrf.mxu0
    %v777 = vadd.f32 0.0, %v776
    %778 = vdwg.mxu0
    %v779 = vmul.f32 %v774, 0.35355338
    %v780 = vmul.f32 %v777, 0.35355338
    %v781 = vsel %vm225, %v779, -inf
    %782 = vmax.xlane.f32.xlu0 %v781
    %v783 = vpop.xlane.xlu0 %782
    %v784 = vsel %vm225, %v780, -inf
    %785 = vmax.xlane.f32.xlu0 %v784
    %v786 = vpop.xlane.xlu0 %785
    %v787 = vsub.f32 %v779, %v783
    %v788 = vsub.f32 %v780, %v786
    %v789 = vmul.f32 %v787, 1.442695
    %v790 = vpow.pop %v789
    %v791 = vmul.f32 %v788, 1.442695
    %v792 = vpow.pop %v791
    %v793 = vsel %vm225, %v790, 0.0
    %794 = vadd.xlane.f32.xlu0 %v793
    %v795 = vpop.xlane.xlu0 %794
    %v796 = vsel %vm225, %v792, 0.0
    %797 = vadd.xlane.f32.xlu0 %v796
    %v798 = vpop.xlane.xlu0 %797
    %v799 = vrcp.pop %v795
    %v800 = vmul.f32 %v795, %v799
    %v801 = vsub.f32 1.0, %v800
    %v802 = vmul.f32 %v799, %v801
    %v803 = vadd.f32 %v799, %v802
    %vm804 = vweird.f32 %v795
    %vm805 = vweird.f32 %v799
    %vm806 = vmor %vm804, %vm805
    %v807 = vsel %vm806, %v799, %v803
    %v808 = vand.u32 2147483647, %v795
    %vm809 = vcmp.eq.f32.partialorder %v808, 8.507059e+37
    %v810 = vand.u32 %v795, 2147483648
    %v811 = vor.u32 1.1754944e-38, %v810
    %v812 = vsel %vm809, %v811, %v807
    %v813 = vmul.f32 %v790, %v812
    %v814 = vrcp.pop %v798
    %v815 = vmul.f32 %v798, %v814
    %v816 = vsub.f32 1.0, %v815
    %v817 = vmul.f32 %v814, %v816
    %v818 = vadd.f32 %v814, %v817
    %vm819 = vweird.f32 %v798
    %vm820 = vweird.f32 %v814
    %vm821 = vmor %vm819, %vm820
    %v822 = vsel %vm821, %v814, %v818
    %v823 = vand.u32 2147483647, %v798
    %vm824 = vcmp.eq.f32.partialorder %v823, 8.507059e+37
    %v825 = vand.u32 %v798, 2147483648
    %v826 = vor.u32 1.1754944e-38, %v825
    %v827 = vsel %vm824, %v826, %v822
    %v828 = vmul.f32 %v792, %v827
    %831 = vrot.lane.b32.xlu0 %v736, 96
    %v832 = vpop.permute.xlu0 %831
    %833 = vrot.lane.b32.xlu0 %v737, 96
    %v834 = vpop.permute.xlu0 %833
    %v838 = vsel %vm225, %v813, 0
    %v841 = vsel %vm225, %v828, 0
    %843 = vmatpush.msra.mxu0 0.0
    %844 = vmatpush.msra.mxu0 0.0
    %845 = vmatpush.msra.mxu0 0.0
    %846 = vmatpush.msra.mxu0 0.0
    %847 = vmatpush.msra.mxu0 0.0
    %848 = vmatpush.msra.mxu0 0.0
    %849 = vmatpush.msra.mxu0 0.0
    %850 = vmatpush.msra.mxu0 0.0
    %851 = vmatpush.msra.mxu0 0.0
    %852 = vmatpush.msra.mxu0 0.0
    %853 = vmatpush.msra.mxu0 0.0
    %854 = vmatpush.msra.mxu0 0.0
    %855 = vmatpush.msra.mxu0 0.0
    %856 = vmatpush.msra.mxu0 0.0
    %857 = vmatpush.msra.mxu0 %v834
    %858 = vmatpush.msra.mxu0 %v832
    %859 = vmatmul.f32.gmra.mxu0 %v838
    %v860 = vpop.f32.mrf.mxu0
    %v861 = vadd.f32 0.0, %v860
    %862 = vmatmul.f32.gmra.mxu0 %v841
    %v863 = vpop.f32.mrf.mxu0
    %v864 = vadd.f32 0.0, %v863
    %865 = vdwg.mxu0
    %868 = vrot.lane.b32.xlu0 %v861, 32
    %v869 = vpop.permute.xlu0 %868
    %870 = vrot.lane.b32.xlu0 %v864, 32
    %v871 = vpop.permute.xlu0 %870
    %vm874 = vcmask 326912
    %875 = vst.msk [vmem:[#allocation3] sm:$0xff] %vm874, %v869
    %876 = vst.msk [vmem:[#allocation3 + $0x8] sm:$0xff] %vm874, %v871
    %v877 = vld [vmem:[#allocation2] sm:$0xff]
    %v878 = vld [vmem:[#allocation2 + $0x10] sm:$0xff]
    %v879 = vld [vmem:[#allocation2 + $0x8] sm:$0xff]
    %v880 = vld [vmem:[#allocation2 + $0x18] sm:$0xff]
    %883 = vrot.lane.b32.xlu0 %v877, 88
    %v884 = vpop.permute.xlu0 %883
    %885 = vrot.lane.b32.xlu0 %v878, 88
    %v886 = vpop.permute.xlu0 %885
    %887 = vrot.lane.b32.xlu0 %v877, 24
    %v888 = vpop.permute.xlu0 %887
    %889 = vrot.lane.b32.xlu0 %v878, 24
    %v890 = vpop.permute.xlu0 %889
    %v891 = vsel %vm191, %v884, 0
    %v893 = vsel %vm191, %v886, 0
    %v895 = vsel %vm191, %v888, 0
    %v897 = vsel %vm191, %v890, 0
    %899 = vmatpush.xpose.msra.mxu0 0.0
    %900 = vmatpush.xpose.msra.mxu0 0.0
    %901 = vmatpush.xpose.msra.mxu0 0.0
    %902 = vmatpush.xpose.msra.mxu0 0.0
    %903 = vmatpush.xpose.msra.mxu0 0.0
    %904 = vmatpush.xpose.msra.mxu0 0.0
    %905 = vmatpush.xpose.msra.mxu0 0.0
    %906 = vmatpush.xpose.msra.mxu0 0.0
    %907 = vmatpush.xpose.msra.mxu0 0.0
    %908 = vmatpush.xpose.msra.mxu0 0.0
    %909 = vmatpush.xpose.msra.mxu0 0.0
    %910 = vmatpush.xpose.msra.mxu0 0.0
    %911 = vmatpush.xpose.msra.mxu0 0.0
    %912 = vmatpush.xpose.msra.mxu0 0.0
    %913 = vmatpush.xpose.msra.mxu0 %v897
    %914 = vmatpush.xpose.msra.mxu0 %v895
    %915 = vmatmul.f32.gmra.mxu0 %v891
    %v916 = vpop.f32.mrf.mxu0
    %v917 = vadd.f32 0.0, %v916
    %918 = vmatmul.f32.gmra.mxu0 %v893
    %v919 = vpop.f32.mrf.mxu0
    %v920 = vadd.f32 0.0, %v919
    %921 = vdwg.mxu0
    %v922 = vmul.f32 %v917, 0.35355338
    %v923 = vmul.f32 %v920, 0.35355338
    %v924 = vsel %vm225, %v922, -inf
    %925 = vmax.xlane.f32.xlu0 %v924
    %v926 = vpop.xlane.xlu0 %925
    %v927 = vsel %vm225, %v923, -inf
    %928 = vmax.xlane.f32.xlu0 %v927
    %v929 = vpop.xlane.xlu0 %928
    %v930 = vsub.f32 %v922, %v926
    %v931 = vsub.f32 %v923, %v929
    %v932 = vmul.f32 %v930, 1.442695
    %v933 = vpow.pop %v932
    %v934 = vmul.f32 %v931, 1.442695
    %v935 = vpow.pop %v934
    %v936 = vsel %vm225, %v933, 0.0
    %937 = vadd.xlane.f32.xlu0 %v936
    %v938 = vpop.xlane.xlu0 %937
    %v939 = vsel %vm225, %v935, 0.0
    %940 = vadd.xlane.f32.xlu0 %v939
    %v941 = vpop.xlane.xlu0 %940
    %v942 = vrcp.pop %v938
    %v943 = vmul.f32 %v938, %v942
    %v944 = vsub.f32 1.0, %v943
    %v945 = vmul.f32 %v942, %v944
    %v946 = vadd.f32 %v942, %v945
    %vm947 = vweird.f32 %v938
    %vm948 = vweird.f32 %v942
    %vm949 = vmor %vm947, %vm948
    %v950 = vsel %vm949, %v942, %v946
    %v951 = vand.u32 2147483647, %v938
    %vm952 = vcmp.eq.f32.partialorder %v951, 8.507059e+37
    %v953 = vand.u32 %v938, 2147483648
    %v954 = vor.u32 1.1754944e-38, %v953
    %v955 = vsel %vm952, %v954, %v950
    %v956 = vmul.f32 %v933, %v955
    %v957 = vrcp.pop %v941
    %v958 = vmul.f32 %v941, %v957
    %v959 = vsub.f32 1.0, %v958
    %v960 = vmul.f32 %v957, %v959
    %v961 = vadd.f32 %v957, %v960
    %vm962 = vweird.f32 %v941
    %vm963 = vweird.f32 %v957
    %vm964 = vmor %vm962, %vm963
    %v965 = vsel %vm964, %v957, %v961
    %v966 = vand.u32 2147483647, %v941
    %vm967 = vcmp.eq.f32.partialorder %v966, 8.507059e+37
    %v968 = vand.u32 %v941, 2147483648
    %v969 = vor.u32 1.1754944e-38, %v968
    %v970 = vsel %vm967, %v969, %v965
    %v971 = vmul.f32 %v935, %v970
    %974 = vrot.lane.b32.xlu0 %v879, 88
    %v975 = vpop.permute.xlu0 %974
    %976 = vrot.lane.b32.xlu0 %v880, 88
    %v977 = vpop.permute.xlu0 %976
    %v981 = vsel %vm225, %v956, 0
    %v984 = vsel %vm225, %v971, 0
    %986 = vmatpush.msra.mxu0 0.0
    %987 = vmatpush.msra.mxu0 0.0
    %988 = vmatpush.msra.mxu0 0.0
    %989 = vmatpush.msra.mxu0 0.0
    %990 = vmatpush.msra.mxu0 0.0
    %991 = vmatpush.msra.mxu0 0.0
    %992 = vmatpush.msra.mxu0 0.0
    %993 = vmatpush.msra.mxu0 0.0
    %994 = vmatpush.msra.mxu0 0.0
    %995 = vmatpush.msra.mxu0 0.0
    %996 = vmatpush.msra.mxu0 0.0
    %997 = vmatpush.msra.mxu0 0.0
    %998 = vmatpush.msra.mxu0 0.0
    %999 = vmatpush.msra.mxu0 0.0
    %1000 = vmatpush.msra.mxu0 %v977
    %1001 = vmatpush.msra.mxu0 %v975
    %1002 = vmatmul.f32.gmra.mxu0 %v981
    %v1003 = vpop.f32.mrf.mxu0
    %v1004 = vadd.f32 0.0, %v1003
    %1005 = vmatmul.f32.gmra.mxu0 %v984
    %v1006 = vpop.f32.mrf.mxu0
    %v1007 = vadd.f32 0.0, %v1006
    %1008 = vdwg.mxu0
    %1011 = vrot.lane.b32.xlu0 %v1004, 40
    %v1012 = vpop.permute.xlu0 %1011
    %1013 = vrot.lane.b32.xlu0 %v1007, 40
    %v1014 = vpop.permute.xlu0 %1013
    %vm1017 = vcmask 392512
    %1018 = vst.msk [vmem:[#allocation3] sm:$0xff] %vm1017, %v1012
    %1019 = vst.msk [vmem:[#allocation3 + $0x8] sm:$0xff] %vm1017, %v1014
    %v1020 = vld [vmem:[#allocation2] sm:$0xff]
    %v1021 = vld [vmem:[#allocation2 + $0x10] sm:$0xff]
    %v1022 = vld [vmem:[#allocation2 + $0x8] sm:$0xff]
    %v1023 = vld [vmem:[#allocation2 + $0x18] sm:$0xff]
    %1026 = vrot.lane.b32.xlu0 %v1020, 80
    %v1027 = vpop.permute.xlu0 %1026
    %1028 = vrot.lane.b32.xlu0 %v1021, 80
    %v1029 = vpop.permute.xlu0 %1028
    %1030 = vrot.lane.b32.xlu0 %v1020, 16
    %v1031 = vpop.permute.xlu0 %1030
    %1032 = vrot.lane.b32.xlu0 %v1021, 16
    %v1033 = vpop.permute.xlu0 %1032
    %v1034 = vsel %vm191, %v1027, 0
    %v1036 = vsel %vm191, %v1029, 0
    %v1038 = vsel %vm191, %v1031, 0
    %v1040 = vsel %vm191, %v1033, 0
    %1042 = vmatpush.xpose.msra.mxu0 0.0
    %1043 = vmatpush.xpose.msra.mxu0 0.0
    %1044 = vmatpush.xpose.msra.mxu0 0.0
    %1045 = vmatpush.xpose.msra.mxu0 0.0
    %1046 = vmatpush.xpose.msra.mxu0 0.0
    %1047 = vmatpush.xpose.msra.mxu0 0.0
    %1048 = vmatpush.xpose.msra.mxu0 0.0
    %1049 = vmatpush.xpose.msra.mxu0 0.0
    %1050 = vmatpush.xpose.msra.mxu0 0.0
    %1051 = vmatpush.xpose.msra.mxu0 0.0
    %1052 = vmatpush.xpose.msra.mxu0 0.0
    %1053 = vmatpush.xpose.msra.mxu0 0.0
    %1054 = vmatpush.xpose.msra.mxu0 0.0
    %1055 = vmatpush.xpose.msra.mxu0 0.0
    %1056 = vmatpush.xpose.msra.mxu0 %v1040
    %1057 = vmatpush.xpose.msra.mxu0 %v1038
    %1058 = vmatmul.f32.gmra.mxu0 %v1034
    %v1059 = vpop.f32.mrf.mxu0
    %v1060 = vadd.f32 0.0, %v1059
    %1061 = vmatmul.f32.gmra.mxu0 %v1036
    %v1062 = vpop.f32.mrf.mxu0
    %v1063 = vadd.f32 0.0, %v1062
    %1064 = vdwg.mxu0
    %v1065 = vmul.f32 %v1060, 0.35355338
    %v1066 = vmul.f32 %v1063, 0.35355338
    %v1067 = vsel %vm225, %v1065, -inf
    %1068 = vmax.xlane.f32.xlu0 %v1067
    %v1069 = vpop.xlane.xlu0 %1068
    %v1070 = vsel %vm225, %v1066, -inf
    %1071 = vmax.xlane.f32.xlu0 %v1070
    %v1072 = vpop.xlane.xlu0 %1071
    %v1073 = vsub.f32 %v1065, %v1069
    %v1074 = vsub.f32 %v1066, %v1072
    %v1075 = vmul.f32 %v1073, 1.442695
    %v1076 = vpow.pop %v1075
    %v1077 = vmul.f32 %v1074, 1.442695
    %v1078 = vpow.pop %v1077
    %v1079 = vsel %vm225, %v1076, 0.0
    %1080 = vadd.xlane.f32.xlu0 %v1079
    %v1081 = vpop.xlane.xlu0 %1080
    %v1082 = vsel %vm225, %v1078, 0.0
    %1083 = vadd.xlane.f32.xlu0 %v1082
    %v1084 = vpop.xlane.xlu0 %1083
    %v1085 = vrcp.pop %v1081
    %v1086 = vmul.f32 %v1081, %v1085
    %v1087 = vsub.f32 1.0, %v1086
    %v1088 = vmul.f32 %v1085, %v1087
    %v1089 = vadd.f32 %v1085, %v1088
    %vm1090 = vweird.f32 %v1081
    %vm1091 = vweird.f32 %v1085
    %vm1092 = vmor %vm1090, %vm1091
    %v1093 = vsel %vm1092, %v1085, %v1089
    %v1094 = vand.u32 2147483647, %v1081
    %vm1095 = vcmp.eq.f32.partialorder %v1094, 8.507059e+37
    %v1096 = vand.u32 %v1081, 2147483648
    %v1097 = vor.u32 1.1754944e-38, %v1096
    %v1098 = vsel %vm1095, %v1097, %v1093
    %v1099 = vmul.f32 %v1076, %v1098
    %v1100 = vrcp.pop %v1084
    %v1101 = vmul.f32 %v1084, %v1100
    %v1102 = vsub.f32 1.0, %v1101
    %v1103 = vmul.f32 %v1100, %v1102
    %v1104 = vadd.f32 %v1100, %v1103
    %vm1105 = vweird.f32 %v1084
    %vm1106 = vweird.f32 %v1100
    %vm1107 = vmor %vm1105, %vm1106
    %v1108 = vsel %vm1107, %v1100, %v1104
    %v1109 = vand.u32 2147483647, %v1084
    %vm1110 = vcmp.eq.f32.partialorder %v1109, 8.507059e+37
    %v1111 = vand.u32 %v1084, 2147483648
    %v1112 = vor.u32 1.1754944e-38, %v1111
    %v1113 = vsel %vm1110, %v1112, %v1108
    %v1114 = vmul.f32 %v1078, %v1113
    %1117 = vrot.lane.b32.xlu0 %v1022, 80
    %v1118 = vpop.permute.xlu0 %1117
    %1119 = vrot.lane.b32.xlu0 %v1023, 80
    %v1120 = vpop.permute.xlu0 %1119
    %v1124 = vsel %vm225, %v1099, 0
    %v1127 = vsel %vm225, %v1114, 0
    %1129 = vmatpush.msra.mxu0 0.0
    %1130 = vmatpush.msra.mxu0 0.0
    %1131 = vmatpush.msra.mxu0 0.0
    %1132 = vmatpush.msra.mxu0 0.0
    %1133 = vmatpush.msra.mxu0 0.0
    %1134 = vmatpush.msra.mxu0 0.0
    %1135 = vmatpush.msra.mxu0 0.0
    %1136 = vmatpush.msra.mxu0 0.0
    %1137 = vmatpush.msra.mxu0 0.0
    %1138 = vmatpush.msra.mxu0 0.0
    %1139 = vmatpush.msra.mxu0 0.0
    %1140 = vmatpush.msra.mxu0 0.0
    %1141 = vmatpush.msra.mxu0 0.0
    %1142 = vmatpush.msra.mxu0 0.0
    %1143 = vmatpush.msra.mxu0 %v1120
    %1144 = vmatpush.msra.mxu0 %v1118
    %1145 = vmatmul.f32.gmra.mxu0 %v1124
    %v1146 = vpop.f32.mrf.mxu0
    %v1147 = vadd.f32 0.0, %v1146
    %1148 = vmatmul.f32.gmra.mxu0 %v1127
    %v1149 = vpop.f32.mrf.mxu0
    %v1150 = vadd.f32 0.0, %v1149
    %1151 = vdwg.mxu0
    %1154 = vrot.lane.b32.xlu0 %v1147, 48
    %v1155 = vpop.permute.xlu0 %1154
    %1156 = vrot.lane.b32.xlu0 %v1150, 48
    %v1157 = vpop.permute.xlu0 %1156
    %vm1160 = vcmask 458112
    %1161 = vst.msk [vmem:[#allocation3] sm:$0xff] %vm1160, %v1155
    %1162 = vst.msk [vmem:[#allocation3 + $0x8] sm:$0xff] %vm1160, %v1157
    %v1163 = vld [vmem:[#allocation2] sm:$0xff]
    %v1164 = vld [vmem:[#allocation2 + $0x10] sm:$0xff]
    %v1165 = vld [vmem:[#allocation2 + $0x8] sm:$0xff]
    %v1166 = vld [vmem:[#allocation2 + $0x18] sm:$0xff]
    %1169 = vrot.lane.b32.xlu0 %v1163, 72
    %v1170 = vpop.permute.xlu0 %1169
    %1171 = vrot.lane.b32.xlu0 %v1164, 72
    %v1172 = vpop.permute.xlu0 %1171
    %1173 = vrot.lane.b32.xlu0 %v1163, 8
    %v1174 = vpop.permute.xlu0 %1173
    %1175 = vrot.lane.b32.xlu0 %v1164, 8
    %v1176 = vpop.permute.xlu0 %1175
    %v1177 = vsel %vm191, %v1170, 0
    %v1179 = vsel %vm191, %v1172, 0
    %v1181 = vsel %vm191, %v1174, 0
    %v1183 = vsel %vm191, %v1176, 0
    %1185 = vmatpush.xpose.msra.mxu0 0.0
    %1186 = vmatpush.xpose.msra.mxu0 0.0
    %1187 = vmatpush.xpose.msra.mxu0 0.0
    %1188 = vmatpush.xpose.msra.mxu0 0.0
    %1189 = vmatpush.xpose.msra.mxu0 0.0
    %1190 = vmatpush.xpose.msra.mxu0 0.0
    %1191 = vmatpush.xpose.msra.mxu0 0.0
    %1192 = vmatpush.xpose.msra.mxu0 0.0
    %1193 = vmatpush.xpose.msra.mxu0 0.0
    %1194 = vmatpush.xpose.msra.mxu0 0.0
    %1195 = vmatpush.xpose.msra.mxu0 0.0
    %1196 = vmatpush.xpose.msra.mxu0 0.0
    %1197 = vmatpush.xpose.msra.mxu0 0.0
    %1198 = vmatpush.xpose.msra.mxu0 0.0
    %1199 = vmatpush.xpose.msra.mxu0 %v1183
    %1200 = vmatpush.xpose.msra.mxu0 %v1181
    %1201 = vmatmul.f32.gmra.mxu0 %v1177
    %v1202 = vpop.f32.mrf.mxu0
    %v1203 = vadd.f32 0.0, %v1202
    %1204 = vmatmul.f32.gmra.mxu0 %v1179
    %v1205 = vpop.f32.mrf.mxu0
    %v1206 = vadd.f32 0.0, %v1205
    %1207 = vdwg.mxu0
    %v1208 = vmul.f32 %v1203, 0.35355338
    %v1209 = vmul.f32 %v1206, 0.35355338
    %v1210 = vsel %vm225, %v1208, -inf
    %1211 = vmax.xlane.f32.xlu0 %v1210
    %v1212 = vpop.xlane.xlu0 %1211
    %v1213 = vsel %vm225, %v1209, -inf
    %1214 = vmax.xlane.f32.xlu0 %v1213
    %v1215 = vpop.xlane.xlu0 %1214
    %v1216 = vsub.f32 %v1208, %v1212
    %v1217 = vsub.f32 %v1209, %v1215
    %v1218 = vmul.f32 %v1216, 1.442695
    %v1219 = vpow.pop %v1218
    %v1220 = vmul.f32 %v1217, 1.442695
    %v1221 = vpow.pop %v1220
    %v1222 = vsel %vm225, %v1219, 0.0
    %1223 = vadd.xlane.f32.xlu0 %v1222
    %v1224 = vpop.xlane.xlu0 %1223
    %v1225 = vsel %vm225, %v1221, 0.0
    %1226 = vadd.xlane.f32.xlu0 %v1225
    %v1227 = vpop.xlane.xlu0 %1226
    %v1228 = vrcp.pop %v1224
    %v1229 = vmul.f32 %v1224, %v1228
    %v1230 = vsub.f32 1.0, %v1229
    %v1231 = vmul.f32 %v1228, %v1230
    %v1232 = vadd.f32 %v1228, %v1231
    %vm1233 = vweird.f32 %v1224
    %vm1234 = vweird.f32 %v1228
    %vm1235 = vmor %vm1233, %vm1234
    %v1236 = vsel %vm1235, %v1228, %v1232
    %v1237 = vand.u32 2147483647, %v1224
    %vm1238 = vcmp.eq.f32.partialorder %v1237, 8.507059e+37
    %v1239 = vand.u32 %v1224, 2147483648
    %v1240 = vor.u32 1.1754944e-38, %v1239
    %v1241 = vsel %vm1238, %v1240, %v1236
    %v1242 = vmul.f32 %v1219, %v1241
    %v1243 = vrcp.pop %v1227
    %v1244 = vmul.f32 %v1227, %v1243
    %v1245 = vsub.f32 1.0, %v1244
    %v1246 = vmul.f32 %v1243, %v1245
    %v1247 = vadd.f32 %v1243, %v1246
    %vm1248 = vweird.f32 %v1227
    %vm1249 = vweird.f32 %v1243
    %vm1250 = vmor %vm1248, %vm1249
    %v1251 = vsel %vm1250, %v1243, %v1247
    %v1252 = vand.u32 2147483647, %v1227
    %vm1253 = vcmp.eq.f32.partialorder %v1252, 8.507059e+37
    %v1254 = vand.u32 %v1227, 2147483648
    %v1255 = vor.u32 1.1754944e-38, %v1254
    %v1256 = vsel %vm1253, %v1255, %v1251
    %v1257 = vmul.f32 %v1221, %v1256
    %1260 = vrot.lane.b32.xlu0 %v1165, 72
    %v1261 = vpop.permute.xlu0 %1260
    %1262 = vrot.lane.b32.xlu0 %v1166, 72
    %v1263 = vpop.permute.xlu0 %1262
    %v1267 = vsel %vm225, %v1242, 0
    %v1270 = vsel %vm225, %v1257, 0
    %1272 = vmatpush.msra.mxu0 0.0
    %1273 = vmatpush.msra.mxu0 0.0
    %1274 = vmatpush.msra.mxu0 0.0
    %1275 = vmatpush.msra.mxu0 0.0
    %1276 = vmatpush.msra.mxu0 0.0
    %1277 = vmatpush.msra.mxu0 0.0
    %1278 = vmatpush.msra.mxu0 0.0
    %1279 = vmatpush.msra.mxu0 0.0
    %1280 = vmatpush.msra.mxu0 0.0
    %1281 = vmatpush.msra.mxu0 0.0
    %1282 = vmatpush.msra.mxu0 0.0
    %1283 = vmatpush.msra.mxu0 0.0
    %1284 = vmatpush.msra.mxu0 0.0
    %1285 = vmatpush.msra.mxu0 0.0
    %1286 = vmatpush.msra.mxu0 %v1263
    %1287 = vmatpush.msra.mxu0 %v1261
    %1288 = vmatmul.f32.gmra.mxu0 %v1267
    %v1289 = vpop.f32.mrf.mxu0
    %v1290 = vadd.f32 0.0, %v1289
    %1291 = vmatmul.f32.gmra.mxu0 %v1270
    %v1292 = vpop.f32.mrf.mxu0
    %v1293 = vadd.f32 0.0, %v1292
    %1294 = vdwg.mxu0
    %1297 = vrot.lane.b32.xlu0 %v1290, 56
    %v1298 = vpop.permute.xlu0 %1297
    %1299 = vrot.lane.b32.xlu0 %v1293, 56
    %v1300 = vpop.permute.xlu0 %1299
    %vm1303 = vcmask 523712
    %1304 = vst.msk [vmem:[#allocation3] sm:$0xff] %vm1303, %v1298
    %1305 = vst.msk [vmem:[#allocation3 + $0x8] sm:$0xff] %vm1303, %v1300
    %v1306 = vld [vmem:[#allocation2 + $0x20] sm:$0xff]
    %v1307 = vld [vmem:[#allocation2 + $0x30] sm:$0xff]
    %v1308 = vld [vmem:[#allocation2 + $0x28] sm:$0xff]
    %v1309 = vld [vmem:[#allocation2 + $0x38] sm:$0xff]
    %1312 = vrot.lane.b32.xlu0 %v1306, 64
    %v1313 = vpop.permute.xlu0 %1312
    %1314 = vrot.lane.b32.xlu0 %v1307, 64
    %v1315 = vpop.permute.xlu0 %1314
    %v1316 = vsel %vm191, %v1306, 0
    %v1318 = vsel %vm191, %v1307, 0
    %v1320 = vsel %vm191, %v1313, 0
    %v1322 = vsel %vm191, %v1315, 0
    %1324 = vmatpush.xpose.msra.mxu0 0.0
    %1325 = vmatpush.xpose.msra.mxu0 0.0
    %1326 = vmatpush.xpose.msra.mxu0 0.0
    %1327 = vmatpush.xpose.msra.mxu0 0.0
    %1328 = vmatpush.xpose.msra.mxu0 0.0
    %1329 = vmatpush.xpose.msra.mxu0 0.0
    %1330 = vmatpush.xpose.msra.mxu0 0.0
    %1331 = vmatpush.xpose.msra.mxu0 0.0
    %1332 = vmatpush.xpose.msra.mxu0 0.0
    %1333 = vmatpush.xpose.msra.mxu0 0.0
    %1334 = vmatpush.xpose.msra.mxu0 0.0
    %1335 = vmatpush.xpose.msra.mxu0 0.0
    %1336 = vmatpush.xpose.msra.mxu0 0.0
    %1337 = vmatpush.xpose.msra.mxu0 0.0
    %1338 = vmatpush.xpose.msra.mxu0 %v1322
    %1339 = vmatpush.xpose.msra.mxu0 %v1320
    %1340 = vmatmul.f32.gmra.mxu0 %v1316
    %v1341 = vpop.f32.mrf.mxu0
    %v1342 = vadd.f32 0.0, %v1341
    %1343 = vmatmul.f32.gmra.mxu0 %v1318
    %v1344 = vpop.f32.mrf.mxu0
    %v1345 = vadd.f32 0.0, %v1344
    %1346 = vdwg.mxu0
    %v1347 = vmul.f32 %v1342, 0.35355338
    %v1348 = vmul.f32 %v1345, 0.35355338
    %v1349 = vsel %vm225, %v1347, -inf
    %1350 = vmax.xlane.f32.xlu0 %v1349
    %v1351 = vpop.xlane.xlu0 %1350
    %v1352 = vsel %vm225, %v1348, -inf
    %1353 = vmax.xlane.f32.xlu0 %v1352
    %v1354 = vpop.xlane.xlu0 %1353
    %v1355 = vsub.f32 %v1347, %v1351
    %v1356 = vsub.f32 %v1348, %v1354
    %v1357 = vmul.f32 %v1355, 1.442695
    %v1358 = vpow.pop %v1357
    %v1359 = vmul.f32 %v1356, 1.442695
    %v1360 = vpow.pop %v1359
    %v1361 = vsel %vm225, %v1358, 0.0
    %1362 = vadd.xlane.f32.xlu0 %v1361
    %v1363 = vpop.xlane.xlu0 %1362
    %v1364 = vsel %vm225, %v1360, 0.0
    %1365 = vadd.xlane.f32.xlu0 %v1364
    %v1366 = vpop.xlane.xlu0 %1365
    %v1367 = vrcp.pop %v1363
    %v1368 = vmul.f32 %v1363, %v1367
    %v1369 = vsub.f32 1.0, %v1368
    %v1370 = vmul.f32 %v1367, %v1369
    %v1371 = vadd.f32 %v1367, %v1370
    %vm1372 = vweird.f32 %v1363
    %vm1373 = vweird.f32 %v1367
    %vm1374 = vmor %vm1372, %vm1373
    %v1375 = vsel %vm1374, %v1367, %v1371
    %v1376 = vand.u32 2147483647, %v1363
    %vm1377 = vcmp.eq.f32.partialorder %v1376, 8.507059e+37
    %v1378 = vand.u32 %v1363, 2147483648
    %v1379 = vor.u32 1.1754944e-38, %v1378
    %v1380 = vsel %vm1377, %v1379, %v1375
    %v1381 = vmul.f32 %v1358, %v1380
    %v1382 = vrcp.pop %v1366
    %v1383 = vmul.f32 %v1366, %v1382
    %v1384 = vsub.f32 1.0, %v1383
    %v1385 = vmul.f32 %v1382, %v1384
    %v1386 = vadd.f32 %v1382, %v1385
    %vm1387 = vweird.f32 %v1366
    %vm1388 = vweird.f32 %v1382
    %vm1389 = vmor %vm1387, %vm1388
    %v1390 = vsel %vm1389, %v1382, %v1386
    %v1391 = vand.u32 2147483647, %v1366
    %vm1392 = vcmp.eq.f32.partialorder %v1391, 8.507059e+37
    %v1393 = vand.u32 %v1366, 2147483648
    %v1394 = vor.u32 1.1754944e-38, %v1393
    %v1395 = vsel %vm1392, %v1394, %v1390
    %v1396 = vmul.f32 %v1360, %v1395
    %v1398 = vsel %vm225, %v1381, 0
    %v1401 = vsel %vm225, %v1396, 0
    %1403 = vmatpush.msra.mxu0 0.0
    %1404 = vmatpush.msra.mxu0 0.0
    %1405 = vmatpush.msra.mxu0 0.0
    %1406 = vmatpush.msra.mxu0 0.0
    %1407 = vmatpush.msra.mxu0 0.0
    %1408 = vmatpush.msra.mxu0 0.0
    %1409 = vmatpush.msra.mxu0 0.0
    %1410 = vmatpush.msra.mxu0 0.0
    %1411 = vmatpush.msra.mxu0 0.0
    %1412 = vmatpush.msra.mxu0 0.0
    %1413 = vmatpush.msra.mxu0 0.0
    %1414 = vmatpush.msra.mxu0 0.0
    %1415 = vmatpush.msra.mxu0 0.0
    %1416 = vmatpush.msra.mxu0 0.0
    %1417 = vmatpush.msra.mxu0 %v1309
    %1418 = vmatpush.msra.mxu0 %v1308
    %1419 = vmatmul.f32.gmra.mxu0 %v1398
    %v1420 = vpop.f32.mrf.mxu0
    %v1421 = vadd.f32 0.0, %v1420
    %1422 = vmatmul.f32.gmra.mxu0 %v1401
    %v1423 = vpop.f32.mrf.mxu0
    %v1424 = vadd.f32 0.0, %v1423
    %1425 = vdwg.mxu0
    %1426 = vst.msk [vmem:[#allocation3 + $0x10] sm:$0xff] %vm191, %v1421
    %1427 = vst.msk [vmem:[#allocation3 + $0x18] sm:$0xff] %vm191, %v1424
    %v1428 = vld [vmem:[#allocation2 + $0x20] sm:$0xff]
    %v1429 = vld [vmem:[#allocation2 + $0x30] sm:$0xff]
    %v1430 = vld [vmem:[#allocation2 + $0x28] sm:$0xff]
    %v1431 = vld [vmem:[#allocation2 + $0x38] sm:$0xff]
    %1434 = vrot.lane.b32.xlu0 %v1428, 120
    %v1435 = vpop.permute.xlu0 %1434
    %1436 = vrot.lane.b32.xlu0 %v1429, 120
    %v1437 = vpop.permute.xlu0 %1436
    %1438 = vrot.lane.b32.xlu0 %v1428, 56
    %v1439 = vpop.permute.xlu0 %1438
    %1440 = vrot.lane.b32.xlu0 %v1429, 56
    %v1441 = vpop.permute.xlu0 %1440
    %v1442 = vsel %vm191, %v1435, 0
    %v1444 = vsel %vm191, %v1437, 0
    %v1446 = vsel %vm191, %v1439, 0
    %v1448 = vsel %vm191, %v1441, 0
    %1450 = vmatpush.xpose.msra.mxu0 0.0
    %1451 = vmatpush.xpose.msra.mxu0 0.0
    %1452 = vmatpush.xpose.msra.mxu0 0.0
    %1453 = vmatpush.xpose.msra.mxu0 0.0
    %1454 = vmatpush.xpose.msra.mxu0 0.0
    %1455 = vmatpush.xpose.msra.mxu0 0.0
    %1456 = vmatpush.xpose.msra.mxu0 0.0
    %1457 = vmatpush.xpose.msra.mxu0 0.0
    %1458 = vmatpush.xpose.msra.mxu0 0.0
    %1459 = vmatpush.xpose.msra.mxu0 0.0
    %1460 = vmatpush.xpose.msra.mxu0 0.0
    %1461 = vmatpush.xpose.msra.mxu0 0.0
    %1462 = vmatpush.xpose.msra.mxu0 0.0
    %1463 = vmatpush.xpose.msra.mxu0 0.0
    %1464 = vmatpush.xpose.msra.mxu0 %v1448
    %1465 = vmatpush.xpose.msra.mxu0 %v1446
    %1466 = vmatmul.f32.gmra.mxu0 %v1442
    %v1467 = vpop.f32.mrf.mxu0
    %v1468 = vadd.f32 0.0, %v1467
    %1469 = vmatmul.f32.gmra.mxu0 %v1444
    %v1470 = vpop.f32.mrf.mxu0
    %v1471 = vadd.f32 0.0, %v1470
    %1472 = vdwg.mxu0
    %v1473 = vmul.f32 %v1468, 0.35355338
    %v1474 = vmul.f32 %v1471, 0.35355338
    %v1475 = vsel %vm225, %v1473, -inf
    %1476 = vmax.xlane.f32.xlu0 %v1475
    %v1477 = vpop.xlane.xlu0 %1476
    %v1478 = vsel %vm225, %v1474, -inf
    %1479 = vmax.xlane.f32.xlu0 %v1478
    %v1480 = vpop.xlane.xlu0 %1479
    %v1481 = vsub.f32 %v1473, %v1477
    %v1482 = vsub.f32 %v1474, %v1480
    %v1483 = vmul.f32 %v1481, 1.442695
    %v1484 = vpow.pop %v1483
    %v1485 = vmul.f32 %v1482, 1.442695
    %v1486 = vpow.pop %v1485
    %v1487 = vsel %vm225, %v1484, 0.0
    %1488 = vadd.xlane.f32.xlu0 %v1487
    %v1489 = vpop.xlane.xlu0 %1488
    %v1490 = vsel %vm225, %v1486, 0.0
    %1491 = vadd.xlane.f32.xlu0 %v1490
    %v1492 = vpop.xlane.xlu0 %1491
    %v1493 = vrcp.pop %v1489
    %v1494 = vmul.f32 %v1489, %v1493
    %v1495 = vsub.f32 1.0, %v1494
    %v1496 = vmul.f32 %v1493, %v1495
    %v1497 = vadd.f32 %v1493, %v1496
    %vm1498 = vweird.f32 %v1489
    %vm1499 = vweird.f32 %v1493
    %vm1500 = vmor %vm1498, %vm1499
    %v1501 = vsel %vm1500, %v1493, %v1497
    %v1502 = vand.u32 2147483647, %v1489
    %vm1503 = vcmp.eq.f32.partialorder %v1502, 8.507059e+37
    %v1504 = vand.u32 %v1489, 2147483648
    %v1505 = vor.u32 1.1754944e-38, %v1504
    %v1506 = vsel %vm1503, %v1505, %v1501
    %v1507 = vmul.f32 %v1484, %v1506
    %v1508 = vrcp.pop %v1492
    %v1509 = vmul.f32 %v1492, %v1508
    %v1510 = vsub.f32 1.0, %v1509
    %v1511 = vmul.f32 %v1508, %v1510
    %v1512 = vadd.f32 %v1508, %v1511
    %vm1513 = vweird.f32 %v1492
    %vm1514 = vweird.f32 %v1508
    %vm1515 = vmor %vm1513, %vm1514
    %v1516 = vsel %vm1515, %v1508, %v1512
    %v1517 = vand.u32 2147483647, %v1492
    %vm1518 = vcmp.eq.f32.partialorder %v1517, 8.507059e+37
    %v1519 = vand.u32 %v1492, 2147483648
    %v1520 = vor.u32 1.1754944e-38, %v1519
    %v1521 = vsel %vm1518, %v1520, %v1516
    %v1522 = vmul.f32 %v1486, %v1521
    %1525 = vrot.lane.b32.xlu0 %v1430, 120
    %v1526 = vpop.permute.xlu0 %1525
    %1527 = vrot.lane.b32.xlu0 %v1431, 120
    %v1528 = vpop.permute.xlu0 %1527
    %v1532 = vsel %vm225, %v1507, 0
    %v1535 = vsel %vm225, %v1522, 0
    %1537 = vmatpush.msra.mxu0 0.0
    %1538 = vmatpush.msra.mxu0 0.0
    %1539 = vmatpush.msra.mxu0 0.0
    %1540 = vmatpush.msra.mxu0 0.0
    %1541 = vmatpush.msra.mxu0 0.0
    %1542 = vmatpush.msra.mxu0 0.0
    %1543 = vmatpush.msra.mxu0 0.0
    %1544 = vmatpush.msra.mxu0 0.0
    %1545 = vmatpush.msra.mxu0 0.0
    %1546 = vmatpush.msra.mxu0 0.0
    %1547 = vmatpush.msra.mxu0 0.0
    %1548 = vmatpush.msra.mxu0 0.0
    %1549 = vmatpush.msra.mxu0 0.0
    %1550 = vmatpush.msra.mxu0 0.0
    %1551 = vmatpush.msra.mxu0 %v1528
    %1552 = vmatpush.msra.mxu0 %v1526
    %1553 = vmatmul.f32.gmra.mxu0 %v1532
    %v1554 = vpop.f32.mrf.mxu0
    %v1555 = vadd.f32 0.0, %v1554
    %1556 = vmatmul.f32.gmra.mxu0 %v1535
    %v1557 = vpop.f32.mrf.mxu0
    %v1558 = vadd.f32 0.0, %v1557
    %1559 = vdwg.mxu0
    %1562 = vrot.lane.b32.xlu0 %v1555, 8
    %v1563 = vpop.permute.xlu0 %1562
    %1564 = vrot.lane.b32.xlu0 %v1558, 8
    %v1565 = vpop.permute.xlu0 %1564
    %1568 = vst.msk [vmem:[#allocation3 + $0x10] sm:$0xff] %vm445, %v1563
    %1569 = vst.msk [vmem:[#allocation3 + $0x18] sm:$0xff] %vm445, %v1565
    %v1570 = vld [vmem:[#allocation2 + $0x20] sm:$0xff]
    %v1571 = vld [vmem:[#allocation2 + $0x30] sm:$0xff]
    %v1572 = vld [vmem:[#allocation2 + $0x28] sm:$0xff]
    %v1573 = vld [vmem:[#allocation2 + $0x38] sm:$0xff]
    %1576 = vrot.lane.b32.xlu0 %v1570, 112
    %v1577 = vpop.permute.xlu0 %1576
    %1578 = vrot.lane.b32.xlu0 %v1571, 112
    %v1579 = vpop.permute.xlu0 %1578
    %1580 = vrot.lane.b32.xlu0 %v1570, 48
    %v1581 = vpop.permute.xlu0 %1580
    %1582 = vrot.lane.b32.xlu0 %v1571, 48
    %v1583 = vpop.permute.xlu0 %1582
    %v1584 = vsel %vm191, %v1577, 0
    %v1586 = vsel %vm191, %v1579, 0
    %v1588 = vsel %vm191, %v1581, 0
    %v1590 = vsel %vm191, %v1583, 0
    %1592 = vmatpush.xpose.msra.mxu0 0.0
    %1593 = vmatpush.xpose.msra.mxu0 0.0
    %1594 = vmatpush.xpose.msra.mxu0 0.0
    %1595 = vmatpush.xpose.msra.mxu0 0.0
    %1596 = vmatpush.xpose.msra.mxu0 0.0
    %1597 = vmatpush.xpose.msra.mxu0 0.0
    %1598 = vmatpush.xpose.msra.mxu0 0.0
    %1599 = vmatpush.xpose.msra.mxu0 0.0
    %1600 = vmatpush.xpose.msra.mxu0 0.0
    %1601 = vmatpush.xpose.msra.mxu0 0.0
    %1602 = vmatpush.xpose.msra.mxu0 0.0
    %1603 = vmatpush.xpose.msra.mxu0 0.0
    %1604 = vmatpush.xpose.msra.mxu0 0.0
    %1605 = vmatpush.xpose.msra.mxu0 0.0
    %1606 = vmatpush.xpose.msra.mxu0 %v1590
    %1607 = vmatpush.xpose.msra.mxu0 %v1588
    %1608 = vmatmul.f32.gmra.mxu0 %v1584
    %v1609 = vpop.f32.mrf.mxu0
    %v1610 = vadd.f32 0.0, %v1609
    %1611 = vmatmul.f32.gmra.mxu0 %v1586
    %v1612 = vpop.f32.mrf.mxu0
    %v1613 = vadd.f32 0.0, %v1612
    %1614 = vdwg.mxu0
    %v1615 = vmul.f32 %v1610, 0.35355338
    %v1616 = vmul.f32 %v1613, 0.35355338
    %v1617 = vsel %vm225, %v1615, -inf
    %1618 = vmax.xlane.f32.xlu0 %v1617
    %v1619 = vpop.xlane.xlu0 %1618
    %v1620 = vsel %vm225, %v1616, -inf
    %1621 = vmax.xlane.f32.xlu0 %v1620
    %v1622 = vpop.xlane.xlu0 %1621
    %v1623 = vsub.f32 %v1615, %v1619
    %v1624 = vsub.f32 %v1616, %v1622
    %v1625 = vmul.f32 %v1623, 1.442695
    %v1626 = vpow.pop %v1625
    %v1627 = vmul.f32 %v1624, 1.442695
    %v1628 = vpow.pop %v1627
    %v1629 = vsel %vm225, %v1626, 0.0
    %1630 = vadd.xlane.f32.xlu0 %v1629
    %v1631 = vpop.xlane.xlu0 %1630
    %v1632 = vsel %vm225, %v1628, 0.0
    %1633 = vadd.xlane.f32.xlu0 %v1632
    %v1634 = vpop.xlane.xlu0 %1633
    %v1635 = vrcp.pop %v1631
    %v1636 = vmul.f32 %v1631, %v1635
    %v1637 = vsub.f32 1.0, %v1636
    %v1638 = vmul.f32 %v1635, %v1637
    %v1639 = vadd.f32 %v1635, %v1638
    %vm1640 = vweird.f32 %v1631
    %vm1641 = vweird.f32 %v1635
    %vm1642 = vmor %vm1640, %vm1641
    %v1643 = vsel %vm1642, %v1635, %v1639
    %v1644 = vand.u32 2147483647, %v1631
    %vm1645 = vcmp.eq.f32.partialorder %v1644, 8.507059e+37
    %v1646 = vand.u32 %v1631, 2147483648
    %v1647 = vor.u32 1.1754944e-38, %v1646
    %v1648 = vsel %vm1645, %v1647, %v1643
    %v1649 = vmul.f32 %v1626, %v1648
    %v1650 = vrcp.pop %v1634
    %v1651 = vmul.f32 %v1634, %v1650
    %v1652 = vsub.f32 1.0, %v1651
    %v1653 = vmul.f32 %v1650, %v1652
    %v1654 = vadd.f32 %v1650, %v1653
    %vm1655 = vweird.f32 %v1634
    %vm1656 = vweird.f32 %v1650
    %vm1657 = vmor %vm1655, %vm1656
    %v1658 = vsel %vm1657, %v1650, %v1654
    %v1659 = vand.u32 2147483647, %v1634
    %vm1660 = vcmp.eq.f32.partialorder %v1659, 8.507059e+37
    %v1661 = vand.u32 %v1634, 2147483648
    %v1662 = vor.u32 1.1754944e-38, %v1661
    %v1663 = vsel %vm1660, %v1662, %v1658
    %v1664 = vmul.f32 %v1628, %v1663
    %1667 = vrot.lane.b32.xlu0 %v1572, 112
    %v1668 = vpop.permute.xlu0 %1667
    %1669 = vrot.lane.b32.xlu0 %v1573, 112
    %v1670 = vpop.permute.xlu0 %1669
    %v1674 = vsel %vm225, %v1649, 0
    %v1677 = vsel %vm225, %v1664, 0
    %1679 = vmatpush.msra.mxu0 0.0
    %1680 = vmatpush.msra.mxu0 0.0
    %1681 = vmatpush.msra.mxu0 0.0
    %1682 = vmatpush.msra.mxu0 0.0
    %1683 = vmatpush.msra.mxu0 0.0
    %1684 = vmatpush.msra.mxu0 0.0
    %1685 = vmatpush.msra.mxu0 0.0
    %1686 = vmatpush.msra.mxu0 0.0
    %1687 = vmatpush.msra.mxu0 0.0
    %1688 = vmatpush.msra.mxu0 0.0
    %1689 = vmatpush.msra.mxu0 0.0
    %1690 = vmatpush.msra.mxu0 0.0
    %1691 = vmatpush.msra.mxu0 0.0
    %1692 = vmatpush.msra.mxu0 0.0
    %1693 = vmatpush.msra.mxu0 %v1670
    %1694 = vmatpush.msra.mxu0 %v1668
    %1695 = vmatmul.f32.gmra.mxu0 %v1674
    %v1696 = vpop.f32.mrf.mxu0
    %v1697 = vadd.f32 0.0, %v1696
    %1698 = vmatmul.f32.gmra.mxu0 %v1677
    %v1699 = vpop.f32.mrf.mxu0
    %v1700 = vadd.f32 0.0, %v1699
    %1701 = vdwg.mxu0
    %1704 = vrot.lane.b32.xlu0 %v1697, 16
    %v1705 = vpop.permute.xlu0 %1704
    %1706 = vrot.lane.b32.xlu0 %v1700, 16
    %v1707 = vpop.permute.xlu0 %1706
    %1710 = vst.msk [vmem:[#allocation3 + $0x10] sm:$0xff] %vm588, %v1705
    %1711 = vst.msk [vmem:[#allocation3 + $0x18] sm:$0xff] %vm588, %v1707
    %v1712 = vld [vmem:[#allocation2 + $0x20] sm:$0xff]
    %v1713 = vld [vmem:[#allocation2 + $0x30] sm:$0xff]
    %v1714 = vld [vmem:[#allocation2 + $0x28] sm:$0xff]
    %v1715 = vld [vmem:[#allocation2 + $0x38] sm:$0xff]
    %1718 = vrot.lane.b32.xlu0 %v1712, 104
    %v1719 = vpop.permute.xlu0 %1718
    %1720 = vrot.lane.b32.xlu0 %v1713, 104
    %v1721 = vpop.permute.xlu0 %1720
    %1722 = vrot.lane.b32.xlu0 %v1712, 40
    %v1723 = vpop.permute.xlu0 %1722
    %1724 = vrot.lane.b32.xlu0 %v1713, 40
    %v1725 = vpop.permute.xlu0 %1724
    %v1726 = vsel %vm191, %v1719, 0
    %v1728 = vsel %vm191, %v1721, 0
    %v1730 = vsel %vm191, %v1723, 0
    %v1732 = vsel %vm191, %v1725, 0
    %1734 = vmatpush.xpose.msra.mxu0 0.0
    %1735 = vmatpush.xpose.msra.mxu0 0.0
    %1736 = vmatpush.xpose.msra.mxu0 0.0
    %1737 = vmatpush.xpose.msra.mxu0 0.0
    %1738 = vmatpush.xpose.msra.mxu0 0.0
    %1739 = vmatpush.xpose.msra.mxu0 0.0
    %1740 = vmatpush.xpose.msra.mxu0 0.0
    %1741 = vmatpush.xpose.msra.mxu0 0.0
    %1742 = vmatpush.xpose.msra.mxu0 0.0
    %1743 = vmatpush.xpose.msra.mxu0 0.0
    %1744 = vmatpush.xpose.msra.mxu0 0.0
    %1745 = vmatpush.xpose.msra.mxu0 0.0
    %1746 = vmatpush.xpose.msra.mxu0 0.0
    %1747 = vmatpush.xpose.msra.mxu0 0.0
    %1748 = vmatpush.xpose.msra.mxu0 %v1732
    %1749 = vmatpush.xpose.msra.mxu0 %v1730
    %1750 = vmatmul.f32.gmra.mxu0 %v1726
    %v1751 = vpop.f32.mrf.mxu0
    %v1752 = vadd.f32 0.0, %v1751
    %1753 = vmatmul.f32.gmra.mxu0 %v1728
    %v1754 = vpop.f32.mrf.mxu0
    %v1755 = vadd.f32 0.0, %v1754
    %1756 = vdwg.mxu0
    %v1757 = vmul.f32 %v1752, 0.35355338
    %v1758 = vmul.f32 %v1755, 0.35355338
    %v1759 = vsel %vm225, %v1757, -inf
    %1760 = vmax.xlane.f32.xlu0 %v1759
    %v1761 = vpop.xlane.xlu0 %1760
    %v1762 = vsel %vm225, %v1758, -inf
    %1763 = vmax.xlane.f32.xlu0 %v1762
    %v1764 = vpop.xlane.xlu0 %1763
    %v1765 = vsub.f32 %v1757, %v1761
    %v1766 = vsub.f32 %v1758, %v1764
    %v1767 = vmul.f32 %v1765, 1.442695
    %v1768 = vpow.pop %v1767
    %v1769 = vmul.f32 %v1766, 1.442695
    %v1770 = vpow.pop %v1769
    %v1771 = vsel %vm225, %v1768, 0.0
    %1772 = vadd.xlane.f32.xlu0 %v1771
    %v1773 = vpop.xlane.xlu0 %1772
    %v1774 = vsel %vm225, %v1770, 0.0
    %1775 = vadd.xlane.f32.xlu0 %v1774
    %v1776 = vpop.xlane.xlu0 %1775
    %v1777 = vrcp.pop %v1773
    %v1778 = vmul.f32 %v1773, %v1777
    %v1779 = vsub.f32 1.0, %v1778
    %v1780 = vmul.f32 %v1777, %v1779
    %v1781 = vadd.f32 %v1777, %v1780
    %vm1782 = vweird.f32 %v1773
    %vm1783 = vweird.f32 %v1777
    %vm1784 = vmor %vm1782, %vm1783
    %v1785 = vsel %vm1784, %v1777, %v1781
    %v1786 = vand.u32 2147483647, %v1773
    %vm1787 = vcmp.eq.f32.partialorder %v1786, 8.507059e+37
    %v1788 = vand.u32 %v1773, 2147483648
    %v1789 = vor.u32 1.1754944e-38, %v1788
    %v1790 = vsel %vm1787, %v1789, %v1785
    %v1791 = vmul.f32 %v1768, %v1790
    %v1792 = vrcp.pop %v1776
    %v1793 = vmul.f32 %v1776, %v1792
    %v1794 = vsub.f32 1.0, %v1793
    %v1795 = vmul.f32 %v1792, %v1794
    %v1796 = vadd.f32 %v1792, %v1795
    %vm1797 = vweird.f32 %v1776
    %vm1798 = vweird.f32 %v1792
    %vm1799 = vmor %vm1797, %vm1798
    %v1800 = vsel %vm1799, %v1792, %v1796
    %v1801 = vand.u32 2147483647, %v1776
    %vm1802 = vcmp.eq.f32.partialorder %v1801, 8.507059e+37
    %v1803 = vand.u32 %v1776, 2147483648
    %v1804 = vor.u32 1.1754944e-38, %v1803
    %v1805 = vsel %vm1802, %v1804, %v1800
    %v1806 = vmul.f32 %v1770, %v1805
    %1809 = vrot.lane.b32.xlu0 %v1714, 104
    %v1810 = vpop.permute.xlu0 %1809
    %1811 = vrot.lane.b32.xlu0 %v1715, 104
    %v1812 = vpop.permute.xlu0 %1811
    %v1816 = vsel %vm225, %v1791, 0
    %v1819 = vsel %vm225, %v1806, 0
    %1821 = vmatpush.msra.mxu0 0.0
    %1822 = vmatpush.msra.mxu0 0.0
    %1823 = vmatpush.msra.mxu0 0.0
    %1824 = vmatpush.msra.mxu0 0.0
    %1825 = vmatpush.msra.mxu0 0.0
    %1826 = vmatpush.msra.mxu0 0.0
    %1827 = vmatpush.msra.mxu0 0.0
    %1828 = vmatpush.msra.mxu0 0.0
    %1829 = vmatpush.msra.mxu0 0.0
    %1830 = vmatpush.msra.mxu0 0.0
    %1831 = vmatpush.msra.mxu0 0.0
    %1832 = vmatpush.msra.mxu0 0.0
    %1833 = vmatpush.msra.mxu0 0.0
    %1834 = vmatpush.msra.mxu0 0.0
    %1835 = vmatpush.msra.mxu0 %v1812
    %1836 = vmatpush.msra.mxu0 %v1810
    %1837 = vmatmul.f32.gmra.mxu0 %v1816
    %v1838 = vpop.f32.mrf.mxu0
    %v1839 = vadd.f32 0.0, %v1838
    %1840 = vmatmul.f32.gmra.mxu0 %v1819
    %v1841 = vpop.f32.mrf.mxu0
    %v1842 = vadd.f32 0.0, %v1841
    %1843 = vdwg.mxu0
    %1846 = vrot.lane.b32.xlu0 %v1839, 24
    %v1847 = vpop.permute.xlu0 %1846
    %1848 = vrot.lane.b32.xlu0 %v1842, 24
    %v1849 = vpop.permute.xlu0 %1848
    %1852 = vst.msk [vmem:[#allocation3 + $0x10] sm:$0xff] %vm731, %v1847
    %1853 = vst.msk [vmem:[#allocation3 + $0x18] sm:$0xff] %vm731, %v1849
    %v1854 = vld [vmem:[#allocation2 + $0x20] sm:$0xff]
    %v1855 = vld [vmem:[#allocation2 + $0x30] sm:$0xff]
    %v1856 = vld [vmem:[#allocation2 + $0x28] sm:$0xff]
    %v1857 = vld [vmem:[#allocation2 + $0x38] sm:$0xff]
    %1860 = vrot.lane.b32.xlu0 %v1854, 96
    %v1861 = vpop.permute.xlu0 %1860
    %1862 = vrot.lane.b32.xlu0 %v1855, 96
    %v1863 = vpop.permute.xlu0 %1862
    %1864 = vrot.lane.b32.xlu0 %v1854, 32
    %v1865 = vpop.permute.xlu0 %1864
    %1866 = vrot.lane.b32.xlu0 %v1855, 32
    %v1867 = vpop.permute.xlu0 %1866
    %v1868 = vsel %vm191, %v1861, 0
    %v1870 = vsel %vm191, %v1863, 0
    %v1872 = vsel %vm191, %v1865, 0
    %v1874 = vsel %vm191, %v1867, 0
    %1876 = vmatpush.xpose.msra.mxu0 0.0
    %1877 = vmatpush.xpose.msra.mxu0 0.0
    %1878 = vmatpush.xpose.msra.mxu0 0.0
    %1879 = vmatpush.xpose.msra.mxu0 0.0
    %1880 = vmatpush.xpose.msra.mxu0 0.0
    %1881 = vmatpush.xpose.msra.mxu0 0.0
    %1882 = vmatpush.xpose.msra.mxu0 0.0
    %1883 = vmatpush.xpose.msra.mxu0 0.0
    %1884 = vmatpush.xpose.msra.mxu0 0.0
    %1885 = vmatpush.xpose.msra.mxu0 0.0
    %1886 = vmatpush.xpose.msra.mxu0 0.0
    %1887 = vmatpush.xpose.msra.mxu0 0.0
    %1888 = vmatpush.xpose.msra.mxu0 0.0
    %1889 = vmatpush.xpose.msra.mxu0 0.0
    %1890 = vmatpush.xpose.msra.mxu0 %v1874
    %1891 = vmatpush.xpose.msra.mxu0 %v1872
    %1892 = vmatmul.f32.gmra.mxu0 %v1868
    %v1893 = vpop.f32.mrf.mxu0
    %v1894 = vadd.f32 0.0, %v1893
    %1895 = vmatmul.f32.gmra.mxu0 %v1870
    %v1896 = vpop.f32.mrf.mxu0
    %v1897 = vadd.f32 0.0, %v1896
    %1898 = vdwg.mxu0
    %v1899 = vmul.f32 %v1894, 0.35355338
    %v1900 = vmul.f32 %v1897, 0.35355338
    %v1901 = vsel %vm225, %v1899, -inf
    %1902 = vmax.xlane.f32.xlu0 %v1901
    %v1903 = vpop.xlane.xlu0 %1902
    %v1904 = vsel %vm225, %v1900, -inf
    %1905 = vmax.xlane.f32.xlu0 %v1904
    %v1906 = vpop.xlane.xlu0 %1905
    %v1907 = vsub.f32 %v1899, %v1903
    %v1908 = vsub.f32 %v1900, %v1906
    %v1909 = vmul.f32 %v1907, 1.442695
    %v1910 = vpow.pop %v1909
    %v1911 = vmul.f32 %v1908, 1.442695
    %v1912 = vpow.pop %v1911
    %v1913 = vsel %vm225, %v1910, 0.0
    %1914 = vadd.xlane.f32.xlu0 %v1913
    %v1915 = vpop.xlane.xlu0 %1914
    %v1916 = vsel %vm225, %v1912, 0.0
    %1917 = vadd.xlane.f32.xlu0 %v1916
    %v1918 = vpop.xlane.xlu0 %1917
    %v1919 = vrcp.pop %v1915
    %v1920 = vmul.f32 %v1915, %v1919
    %v1921 = vsub.f32 1.0, %v1920
    %v1922 = vmul.f32 %v1919, %v1921
    %v1923 = vadd.f32 %v1919, %v1922
    %vm1924 = vweird.f32 %v1915
    %vm1925 = vweird.f32 %v1919
    %vm1926 = vmor %vm1924, %vm1925
    %v1927 = vsel %vm1926, %v1919, %v1923
    %v1928 = vand.u32 2147483647, %v1915
    %vm1929 = vcmp.eq.f32.partialorder %v1928, 8.507059e+37
    %v1930 = vand.u32 %v1915, 2147483648
    %v1931 = vor.u32 1.1754944e-38, %v1930
    %v1932 = vsel %vm1929, %v1931, %v1927
    %v1933 = vmul.f32 %v1910, %v1932
    %v1934 = vrcp.pop %v1918
    %v1935 = vmul.f32 %v1918, %v1934
    %v1936 = vsub.f32 1.0, %v1935
    %v1937 = vmul.f32 %v1934, %v1936
    %v1938 = vadd.f32 %v1934, %v1937
    %vm1939 = vweird.f32 %v1918
    %vm1940 = vweird.f32 %v1934
    %vm1941 = vmor %vm1939, %vm1940
    %v1942 = vsel %vm1941, %v1934, %v1938
    %v1943 = vand.u32 2147483647, %v1918
    %vm1944 = vcmp.eq.f32.partialorder %v1943, 8.507059e+37
    %v1945 = vand.u32 %v1918, 2147483648
    %v1946 = vor.u32 1.1754944e-38, %v1945
    %v1947 = vsel %vm1944, %v1946, %v1942
    %v1948 = vmul.f32 %v1912, %v1947
    %1951 = vrot.lane.b32.xlu0 %v1856, 96
    %v1952 = vpop.permute.xlu0 %1951
    %1953 = vrot.lane.b32.xlu0 %v1857, 96
    %v1954 = vpop.permute.xlu0 %1953
    %v1958 = vsel %vm225, %v1933, 0
    %v1961 = vsel %vm225, %v1948, 0
    %1963 = vmatpush.msra.mxu0 0.0
    %1964 = vmatpush.msra.mxu0 0.0
    %1965 = vmatpush.msra.mxu0 0.0
    %1966 = vmatpush.msra.mxu0 0.0
    %1967 = vmatpush.msra.mxu0 0.0
    %1968 = vmatpush.msra.mxu0 0.0
    %1969 = vmatpush.msra.mxu0 0.0
    %1970 = vmatpush.msra.mxu0 0.0
    %1971 = vmatpush.msra.mxu0 0.0
    %1972 = vmatpush.msra.mxu0 0.0
    %1973 = vmatpush.msra.mxu0 0.0
    %1974 = vmatpush.msra.mxu0 0.0
    %1975 = vmatpush.msra.mxu0 0.0
    %1976 = vmatpush.msra.mxu0 0.0
    %1977 = vmatpush.msra.mxu0 %v1954
    %1978 = vmatpush.msra.mxu0 %v1952
    %1979 = vmatmul.f32.gmra.mxu0 %v1958
    %v1980 = vpop.f32.mrf.mxu0
    %v1981 = vadd.f32 0.0, %v1980
    %1982 = vmatmul.f32.gmra.mxu0 %v1961
    %v1983 = vpop.f32.mrf.mxu0
    %v1984 = vadd.f32 0.0, %v1983
    %1985 = vdwg.mxu0
    %1988 = vrot.lane.b32.xlu0 %v1981, 32
    %v1989 = vpop.permute.xlu0 %1988
    %1990 = vrot.lane.b32.xlu0 %v1984, 32
    %v1991 = vpop.permute.xlu0 %1990
    %1994 = vst.msk [vmem:[#allocation3 + $0x10] sm:$0xff] %vm874, %v1989
    %1995 = vst.msk [vmem:[#allocation3 + $0x18] sm:$0xff] %vm874, %v1991
    %v1996 = vld [vmem:[#allocation2 + $0x20] sm:$0xff]
    %v1997 = vld [vmem:[#allocation2 + $0x30] sm:$0xff]
    %v1998 = vld [vmem:[#allocation2 + $0x28] sm:$0xff]
    %v1999 = vld [vmem:[#allocation2 + $0x38] sm:$0xff]
    %2002 = vrot.lane.b32.xlu0 %v1996, 88
    %v2003 = vpop.permute.xlu0 %2002
    %2004 = vrot.lane.b32.xlu0 %v1997, 88
    %v2005 = vpop.permute.xlu0 %2004
    %2006 = vrot.lane.b32.xlu0 %v1996, 24
    %v2007 = vpop.permute.xlu0 %2006
    %2008 = vrot.lane.b32.xlu0 %v1997, 24
    %v2009 = vpop.permute.xlu0 %2008
    %v2010 = vsel %vm191, %v2003, 0
    %v2012 = vsel %vm191, %v2005, 0
    %v2014 = vsel %vm191, %v2007, 0
    %v2016 = vsel %vm191, %v2009, 0
    %2018 = vmatpush.xpose.msra.mxu0 0.0
    %2019 = vmatpush.xpose.msra.mxu0 0.0
    %2020 = vmatpush.xpose.msra.mxu0 0.0
    %2021 = vmatpush.xpose.msra.mxu0 0.0
    %2022 = vmatpush.xpose.msra.mxu0 0.0
    %2023 = vmatpush.xpose.msra.mxu0 0.0
    %2024 = vmatpush.xpose.msra.mxu0 0.0
    %2025 = vmatpush.xpose.msra.mxu0 0.0
    %2026 = vmatpush.xpose.msra.mxu0 0.0
    %2027 = vmatpush.xpose.msra.mxu0 0.0
    %2028 = vmatpush.xpose.msra.mxu0 0.0
    %2029 = vmatpush.xpose.msra.mxu0 0.0
    %2030 = vmatpush.xpose.msra.mxu0 0.0
    %2031 = vmatpush.xpose.msra.mxu0 0.0
    %2032 = vmatpush.xpose.msra.mxu0 %v2016
    %2033 = vmatpush.xpose.msra.mxu0 %v2014
    %2034 = vmatmul.f32.gmra.mxu0 %v2010
    %v2035 = vpop.f32.mrf.mxu0
    %v2036 = vadd.f32 0.0, %v2035
    %2037 = vmatmul.f32.gmra.mxu0 %v2012
    %v2038 = vpop.f32.mrf.mxu0
    %v2039 = vadd.f32 0.0, %v2038
    %2040 = vdwg.mxu0
    %v2041 = vmul.f32 %v2036, 0.35355338
    %v2042 = vmul.f32 %v2039, 0.35355338
    %v2043 = vsel %vm225, %v2041, -inf
    %2044 = vmax.xlane.f32.xlu0 %v2043
    %v2045 = vpop.xlane.xlu0 %2044
    %v2046 = vsel %vm225, %v2042, -inf
    %2047 = vmax.xlane.f32.xlu0 %v2046
    %v2048 = vpop.xlane.xlu0 %2047
    %v2049 = vsub.f32 %v2041, %v2045
    %v2050 = vsub.f32 %v2042, %v2048
    %v2051 = vmul.f32 %v2049, 1.442695
    %v2052 = vpow.pop %v2051
    %v2053 = vmul.f32 %v2050, 1.442695
    %v2054 = vpow.pop %v2053
    %v2055 = vsel %vm225, %v2052, 0.0
    %2056 = vadd.xlane.f32.xlu0 %v2055
    %v2057 = vpop.xlane.xlu0 %2056
    %v2058 = vsel %vm225, %v2054, 0.0
    %2059 = vadd.xlane.f32.xlu0 %v2058
    %v2060 = vpop.xlane.xlu0 %2059
    %v2061 = vrcp.pop %v2057
    %v2062 = vmul.f32 %v2057, %v2061
    %v2063 = vsub.f32 1.0, %v2062
    %v2064 = vmul.f32 %v2061, %v2063
    %v2065 = vadd.f32 %v2061, %v2064
    %vm2066 = vweird.f32 %v2057
    %vm2067 = vweird.f32 %v2061
    %vm2068 = vmor %vm2066, %vm2067
    %v2069 = vsel %vm2068, %v2061, %v2065
    %v2070 = vand.u32 2147483647, %v2057
    %vm2071 = vcmp.eq.f32.partialorder %v2070, 8.507059e+37
    %v2072 = vand.u32 %v2057, 2147483648
    %v2073 = vor.u32 1.1754944e-38, %v2072
    %v2074 = vsel %vm2071, %v2073, %v2069
    %v2075 = vmul.f32 %v2052, %v2074
    %v2076 = vrcp.pop %v2060
    %v2077 = vmul.f32 %v2060, %v2076
    %v2078 = vsub.f32 1.0, %v2077
    %v2079 = vmul.f32 %v2076, %v2078
    %v2080 = vadd.f32 %v2076, %v2079
    %vm2081 = vweird.f32 %v2060
    %vm2082 = vweird.f32 %v2076
    %vm2083 = vmor %vm2081, %vm2082
    %v2084 = vsel %vm2083, %v2076, %v2080
    %v2085 = vand.u32 2147483647, %v2060
    %vm2086 = vcmp.eq.f32.partialorder %v2085, 8.507059e+37
    %v2087 = vand.u32 %v2060, 2147483648
    %v2088 = vor.u32 1.1754944e-38, %v2087
    %v2089 = vsel %vm2086, %v2088, %v2084
    %v2090 = vmul.f32 %v2054, %v2089
    %2093 = vrot.lane.b32.xlu0 %v1998, 88
    %v2094 = vpop.permute.xlu0 %2093
    %2095 = vrot.lane.b32.xlu0 %v1999, 88
    %v2096 = vpop.permute.xlu0 %2095
    %v2100 = vsel %vm225, %v2075, 0
    %v2103 = vsel %vm225, %v2090, 0
    %2105 = vmatpush.msra.mxu0 0.0
    %2106 = vmatpush.msra.mxu0 0.0
    %2107 = vmatpush.msra.mxu0 0.0
    %2108 = vmatpush.msra.mxu0 0.0
    %2109 = vmatpush.msra.mxu0 0.0
    %2110 = vmatpush.msra.mxu0 0.0
    %2111 = vmatpush.msra.mxu0 0.0
    %2112 = vmatpush.msra.mxu0 0.0
    %2113 = vmatpush.msra.mxu0 0.0
    %2114 = vmatpush.msra.mxu0 0.0
    %2115 = vmatpush.msra.mxu0 0.0
    %2116 = vmatpush.msra.mxu0 0.0
    %2117 = vmatpush.msra.mxu0 0.0
    %2118 = vmatpush.msra.mxu0 0.0
    %2119 = vmatpush.msra.mxu0 %v2096
    %2120 = vmatpush.msra.mxu0 %v2094
    %2121 = vmatmul.f32.gmra.mxu0 %v2100
    %v2122 = vpop.f32.mrf.mxu0
    %v2123 = vadd.f32 0.0, %v2122
    %2124 = vmatmul.f32.gmra.mxu0 %v2103
    %v2125 = vpop.f32.mrf.mxu0
    %v2126 = vadd.f32 0.0, %v2125
    %2127 = vdwg.mxu0
    %2130 = vrot.lane.b32.xlu0 %v2123, 40
    %v2131 = vpop.permute.xlu0 %2130
    %2132 = vrot.lane.b32.xlu0 %v2126, 40
    %v2133 = vpop.permute.xlu0 %2132
    %2136 = vst.msk [vmem:[#allocation3 + $0x10] sm:$0xff] %vm1017, %v2131
    %2137 = vst.msk [vmem:[#allocation3 + $0x18] sm:$0xff] %vm1017, %v2133
    %v2138 = vld [vmem:[#allocation2 + $0x20] sm:$0xff]
    %v2139 = vld [vmem:[#allocation2 + $0x30] sm:$0xff]
    %v2140 = vld [vmem:[#allocation2 + $0x28] sm:$0xff]
    %v2141 = vld [vmem:[#allocation2 + $0x38] sm:$0xff]
    %2144 = vrot.lane.b32.xlu0 %v2138, 80
    %v2145 = vpop.permute.xlu0 %2144
    %2146 = vrot.lane.b32.xlu0 %v2139, 80
    %v2147 = vpop.permute.xlu0 %2146
    %2148 = vrot.lane.b32.xlu0 %v2138, 16
    %v2149 = vpop.permute.xlu0 %2148
    %2150 = vrot.lane.b32.xlu0 %v2139, 16
    %v2151 = vpop.permute.xlu0 %2150
    %v2152 = vsel %vm191, %v2145, 0
    %v2154 = vsel %vm191, %v2147, 0
    %v2156 = vsel %vm191, %v2149, 0
    %v2158 = vsel %vm191, %v2151, 0
    %2160 = vmatpush.xpose.msra.mxu0 0.0
    %2161 = vmatpush.xpose.msra.mxu0 0.0
    %2162 = vmatpush.xpose.msra.mxu0 0.0
    %2163 = vmatpush.xpose.msra.mxu0 0.0
    %2164 = vmatpush.xpose.msra.mxu0 0.0
    %2165 = vmatpush.xpose.msra.mxu0 0.0
    %2166 = vmatpush.xpose.msra.mxu0 0.0
    %2167 = vmatpush.xpose.msra.mxu0 0.0
    %2168 = vmatpush.xpose.msra.mxu0 0.0
    %2169 = vmatpush.xpose.msra.mxu0 0.0
    %2170 = vmatpush.xpose.msra.mxu0 0.0
    %2171 = vmatpush.xpose.msra.mxu0 0.0
    %2172 = vmatpush.xpose.msra.mxu0 0.0
    %2173 = vmatpush.xpose.msra.mxu0 0.0
    %2174 = vmatpush.xpose.msra.mxu0 %v2158
    %2175 = vmatpush.xpose.msra.mxu0 %v2156
    %2176 = vmatmul.f32.gmra.mxu0 %v2152
    %v2177 = vpop.f32.mrf.mxu0
    %v2178 = vadd.f32 0.0, %v2177
    %2179 = vmatmul.f32.gmra.mxu0 %v2154
    %v2180 = vpop.f32.mrf.mxu0
    %v2181 = vadd.f32 0.0, %v2180
    %2182 = vdwg.mxu0
    %v2183 = vmul.f32 %v2178, 0.35355338
    %v2184 = vmul.f32 %v2181, 0.35355338
    %v2185 = vsel %vm225, %v2183, -inf
    %2186 = vmax.xlane.f32.xlu0 %v2185
    %v2187 = vpop.xlane.xlu0 %2186
    %v2188 = vsel %vm225, %v2184, -inf
    %2189 = vmax.xlane.f32.xlu0 %v2188
    %v2190 = vpop.xlane.xlu0 %2189
    %v2191 = vsub.f32 %v2183, %v2187
    %v2192 = vsub.f32 %v2184, %v2190
    %v2193 = vmul.f32 %v2191, 1.442695
    %v2194 = vpow.pop %v2193
    %v2195 = vmul.f32 %v2192, 1.442695
    %v2196 = vpow.pop %v2195
    %v2197 = vsel %vm225, %v2194, 0.0
    %2198 = vadd.xlane.f32.xlu0 %v2197
    %v2199 = vpop.xlane.xlu0 %2198
    %v2200 = vsel %vm225, %v2196, 0.0
    %2201 = vadd.xlane.f32.xlu0 %v2200
    %v2202 = vpop.xlane.xlu0 %2201
    %v2203 = vrcp.pop %v2199
    %v2204 = vmul.f32 %v2199, %v2203
    %v2205 = vsub.f32 1.0, %v2204
    %v2206 = vmul.f32 %v2203, %v2205
    %v2207 = vadd.f32 %v2203, %v2206
    %vm2208 = vweird.f32 %v2199
    %vm2209 = vweird.f32 %v2203
    %vm2210 = vmor %vm2208, %vm2209
    %v2211 = vsel %vm2210, %v2203, %v2207
    %v2212 = vand.u32 2147483647, %v2199
    %vm2213 = vcmp.eq.f32.partialorder %v2212, 8.507059e+37
    %v2214 = vand.u32 %v2199, 2147483648
    %v2215 = vor.u32 1.1754944e-38, %v2214
    %v2216 = vsel %vm2213, %v2215, %v2211
    %v2217 = vmul.f32 %v2194, %v2216
    %v2218 = vrcp.pop %v2202
    %v2219 = vmul.f32 %v2202, %v2218
    %v2220 = vsub.f32 1.0, %v2219
    %v2221 = vmul.f32 %v2218, %v2220
    %v2222 = vadd.f32 %v2218, %v2221
    %vm2223 = vweird.f32 %v2202
    %vm2224 = vweird.f32 %v2218
    %vm2225 = vmor %vm2223, %vm2224
    %v2226 = vsel %vm2225, %v2218, %v2222
    %v2227 = vand.u32 2147483647, %v2202
    %vm2228 = vcmp.eq.f32.partialorder %v2227, 8.507059e+37
    %v2229 = vand.u32 %v2202, 2147483648
    %v2230 = vor.u32 1.1754944e-38, %v2229
    %v2231 = vsel %vm2228, %v2230, %v2226
    %v2232 = vmul.f32 %v2196, %v2231
    %2235 = vrot.lane.b32.xlu0 %v2140, 80
    %v2236 = vpop.permute.xlu0 %2235
    %2237 = vrot.lane.b32.xlu0 %v2141, 80
    %v2238 = vpop.permute.xlu0 %2237
    %v2242 = vsel %vm225, %v2217, 0
    %v2245 = vsel %vm225, %v2232, 0
    %2247 = vmatpush.msra.mxu0 0.0
    %2248 = vmatpush.msra.mxu0 0.0
    %2249 = vmatpush.msra.mxu0 0.0
    %2250 = vmatpush.msra.mxu0 0.0
    %2251 = vmatpush.msra.mxu0 0.0
    %2252 = vmatpush.msra.mxu0 0.0
    %2253 = vmatpush.msra.mxu0 0.0
    %2254 = vmatpush.msra.mxu0 0.0
    %2255 = vmatpush.msra.mxu0 0.0
    %2256 = vmatpush.msra.mxu0 0.0
    %2257 = vmatpush.msra.mxu0 0.0
    %2258 = vmatpush.msra.mxu0 0.0
    %2259 = vmatpush.msra.mxu0 0.0
    %2260 = vmatpush.msra.mxu0 0.0
    %2261 = vmatpush.msra.mxu0 %v2238
    %2262 = vmatpush.msra.mxu0 %v2236
    %2263 = vmatmul.f32.gmra.mxu0 %v2242
    %v2264 = vpop.f32.mrf.mxu0
    %v2265 = vadd.f32 0.0, %v2264
    %2266 = vmatmul.f32.gmra.mxu0 %v2245
    %v2267 = vpop.f32.mrf.mxu0
    %v2268 = vadd.f32 0.0, %v2267
    %2269 = vdwg.mxu0
    %2272 = vrot.lane.b32.xlu0 %v2265, 48
    %v2273 = vpop.permute.xlu0 %2272
    %2274 = vrot.lane.b32.xlu0 %v2268, 48
    %v2275 = vpop.permute.xlu0 %2274
    %2278 = vst.msk [vmem:[#allocation3 + $0x10] sm:$0xff] %vm1160, %v2273
    %2279 = vst.msk [vmem:[#allocation3 + $0x18] sm:$0xff] %vm1160, %v2275
    %v2280 = vld [vmem:[#allocation2 + $0x20] sm:$0xff]
    %v2281 = vld [vmem:[#allocation2 + $0x30] sm:$0xff]
    %v2282 = vld [vmem:[#allocation2 + $0x28] sm:$0xff]
    %v2283 = vld [vmem:[#allocation2 + $0x38] sm:$0xff]
    %2286 = vrot.lane.b32.xlu0 %v2280, 72
    %v2287 = vpop.permute.xlu0 %2286
    %2288 = vrot.lane.b32.xlu0 %v2281, 72
    %v2289 = vpop.permute.xlu0 %2288
    %2290 = vrot.lane.b32.xlu0 %v2280, 8
    %v2291 = vpop.permute.xlu0 %2290
    %2292 = vrot.lane.b32.xlu0 %v2281, 8
    %v2293 = vpop.permute.xlu0 %2292
    %v2294 = vsel %vm191, %v2287, 0
    %v2296 = vsel %vm191, %v2289, 0
    %v2298 = vsel %vm191, %v2291, 0
    %v2300 = vsel %vm191, %v2293, 0
    %2302 = vmatpush.xpose.msra.mxu0 0.0
    %2303 = vmatpush.xpose.msra.mxu0 0.0
    %2304 = vmatpush.xpose.msra.mxu0 0.0
    %2305 = vmatpush.xpose.msra.mxu0 0.0
    %2306 = vmatpush.xpose.msra.mxu0 0.0
    %2307 = vmatpush.xpose.msra.mxu0 0.0
    %2308 = vmatpush.xpose.msra.mxu0 0.0
    %2309 = vmatpush.xpose.msra.mxu0 0.0
    %2310 = vmatpush.xpose.msra.mxu0 0.0
    %2311 = vmatpush.xpose.msra.mxu0 0.0
    %2312 = vmatpush.xpose.msra.mxu0 0.0
    %2313 = vmatpush.xpose.msra.mxu0 0.0
    %2314 = vmatpush.xpose.msra.mxu0 0.0
    %2315 = vmatpush.xpose.msra.mxu0 0.0
    %2316 = vmatpush.xpose.msra.mxu0 %v2300
    %2317 = vmatpush.xpose.msra.mxu0 %v2298
    %2318 = vmatmul.f32.gmra.mxu0 %v2294
    %v2319 = vpop.f32.mrf.mxu0
    %v2320 = vadd.f32 0.0, %v2319
    %2321 = vmatmul.f32.gmra.mxu0 %v2296
    %v2322 = vpop.f32.mrf.mxu0
    %v2323 = vadd.f32 0.0, %v2322
    %2324 = vdwg.mxu0
    %v2325 = vmul.f32 %v2320, 0.35355338
    %v2326 = vmul.f32 %v2323, 0.35355338
    %v2327 = vsel %vm225, %v2325, -inf
    %2328 = vmax.xlane.f32.xlu0 %v2327
    %v2329 = vpop.xlane.xlu0 %2328
    %v2330 = vsel %vm225, %v2326, -inf
    %2331 = vmax.xlane.f32.xlu0 %v2330
    %v2332 = vpop.xlane.xlu0 %2331
    %v2333 = vsub.f32 %v2325, %v2329
    %v2334 = vsub.f32 %v2326, %v2332
    %v2335 = vmul.f32 %v2333, 1.442695
    %v2336 = vpow.pop %v2335
    %v2337 = vmul.f32 %v2334, 1.442695
    %v2338 = vpow.pop %v2337
    %v2339 = vsel %vm225, %v2336, 0.0
    %2340 = vadd.xlane.f32.xlu0 %v2339
    %v2341 = vpop.xlane.xlu0 %2340
    %v2342 = vsel %vm225, %v2338, 0.0
    %2343 = vadd.xlane.f32.xlu0 %v2342
    %v2344 = vpop.xlane.xlu0 %2343
    %v2345 = vrcp.pop %v2341
    %v2346 = vmul.f32 %v2341, %v2345
    %v2347 = vsub.f32 1.0, %v2346
    %v2348 = vmul.f32 %v2345, %v2347
    %v2349 = vadd.f32 %v2345, %v2348
    %vm2350 = vweird.f32 %v2341
    %vm2351 = vweird.f32 %v2345
    %vm2352 = vmor %vm2350, %vm2351
    %v2353 = vsel %vm2352, %v2345, %v2349
    %v2354 = vand.u32 2147483647, %v2341
    %vm2355 = vcmp.eq.f32.partialorder %v2354, 8.507059e+37
    %v2356 = vand.u32 %v2341, 2147483648
    %v2357 = vor.u32 1.1754944e-38, %v2356
    %v2358 = vsel %vm2355, %v2357, %v2353
    %v2359 = vmul.f32 %v2336, %v2358
    %v2360 = vrcp.pop %v2344
    %v2361 = vmul.f32 %v2344, %v2360
    %v2362 = vsub.f32 1.0, %v2361
    %v2363 = vmul.f32 %v2360, %v2362
    %v2364 = vadd.f32 %v2360, %v2363
    %vm2365 = vweird.f32 %v2344
    %vm2366 = vweird.f32 %v2360
    %vm2367 = vmor %vm2365, %vm2366
    %v2368 = vsel %vm2367, %v2360, %v2364
    %v2369 = vand.u32 2147483647, %v2344
    %vm2370 = vcmp.eq.f32.partialorder %v2369, 8.507059e+37
    %v2371 = vand.u32 %v2344, 2147483648
    %v2372 = vor.u32 1.1754944e-38, %v2371
    %v2373 = vsel %vm2370, %v2372, %v2368
    %v2374 = vmul.f32 %v2338, %v2373
    %2377 = vrot.lane.b32.xlu0 %v2282, 72
    %v2378 = vpop.permute.xlu0 %2377
    %2379 = vrot.lane.b32.xlu0 %v2283, 72
    %v2380 = vpop.permute.xlu0 %2379
    %v2384 = vsel %vm225, %v2359, 0
    %v2387 = vsel %vm225, %v2374, 0
    %2389 = vmatpush.msra.mxu0 0.0
    %2390 = vmatpush.msra.mxu0 0.0
    %2391 = vmatpush.msra.mxu0 0.0
    %2392 = vmatpush.msra.mxu0 0.0
    %2393 = vmatpush.msra.mxu0 0.0
    %2394 = vmatpush.msra.mxu0 0.0
    %2395 = vmatpush.msra.mxu0 0.0
    %2396 = vmatpush.msra.mxu0 0.0
    %2397 = vmatpush.msra.mxu0 0.0
    %2398 = vmatpush.msra.mxu0 0.0
    %2399 = vmatpush.msra.mxu0 0.0
    %2400 = vmatpush.msra.mxu0 0.0
    %2401 = vmatpush.msra.mxu0 0.0
    %2402 = vmatpush.msra.mxu0 0.0
    %2403 = vmatpush.msra.mxu0 %v2380
    %2404 = vmatpush.msra.mxu0 %v2378
    %2405 = vmatmul.f32.gmra.mxu0 %v2384
    %v2406 = vpop.f32.mrf.mxu0
    %v2407 = vadd.f32 0.0, %v2406
    %2408 = vmatmul.f32.gmra.mxu0 %v2387
    %v2409 = vpop.f32.mrf.mxu0
    %v2410 = vadd.f32 0.0, %v2409
    %2411 = vdwg.mxu0
    %2414 = vrot.lane.b32.xlu0 %v2407, 56
    %v2415 = vpop.permute.xlu0 %2414
    %2416 = vrot.lane.b32.xlu0 %v2410, 56
    %v2417 = vpop.permute.xlu0 %2416
    %2420 = vst.msk [vmem:[#allocation3 + $0x10] sm:$0xff] %vm1303, %v2415
    %2421 = vst.msk [vmem:[#allocation3 + $0x18] sm:$0xff] %vm1303, %v2417
    %v2422 = vld [vmem:[#allocation3] sm:$0xff]
    %v2423 = vld [vmem:[#allocation3 + $0x8] sm:$0xff]
    %v2424 = vld [vmem:[#allocation3 + $0x10] sm:$0xff]
    %v2425 = vld [vmem:[#allocation3 + $0x18] sm:$0xff]
    %v2426 = vpack.c.bf16 %v2423, %v2422
    %v2427 = vpack.c.bf16 %v2425, %v2424
    %v2428 = vld [vmem:[#allocation9] sm:$0xf]
    %v2429 = vld [vmem:[#allocation9 + $0x4] sm:$0xf]
    %v2430 = vld [vmem:[#allocation9 + $0x8] sm:$0xf]
    %v2431 = vld [vmem:[#allocation9 + $0xc] sm:$0xf]
    %v2432 = vld [vmem:[#allocation9 + $0x10] sm:$0xf]
    %v2433 = vld [vmem:[#allocation9 + $0x14] sm:$0xf]
    %v2434 = vld [vmem:[#allocation9 + $0x18] sm:$0xf]
    %v2435 = vld [vmem:[#allocation9 + $0x1c] sm:$0xf]
    %v2436 = vld [vmem:[%s3] sm:$0x1]
    %v2438 = vperm.slane %v2436, 0
    %v2448 = vunpack.c.l.b16 %v2428
    %v2449 = vunpack.c.l.b16 %v2429
    %v2450 = vunpack.c.l.b16 %v2430
    %v2451 = vunpack.c.l.b16 %v2431
    %v2452 = vunpack.c.l.b16 %v2432
    %v2453 = vunpack.c.l.b16 %v2433
    %v2454 = vunpack.c.l.b16 %v2434
    %v2455 = vunpack.c.l.b16 %v2435
    %v2456 = vpack.c.b16 %v2449, %v2448
    %v2457 = vpack.c.b16 %v2451, %v2450
    %v2458 = vpack.c.b16 %v2453, %v2452
    %v2459 = vpack.c.b16 %v2455, %v2454
    %v2465 = vsel %vm128, %v2426, 0
    %v2468 = vsel %vm128, %v2427, 0
    %2470 = vmatpush.bf16.msra.mxu0 0
    %2471 = vmatpush.bf16.msra.mxu0 0
    %2472 = vmatpush.bf16.msra.mxu0 0
    %2473 = vmatpush.bf16.msra.mxu0 0
    %2474 = vmatpush.bf16.msra.mxu0 %v2459
    %2475 = vmatpush.bf16.msra.mxu0 %v2458
    %2476 = vmatpush.bf16.msra.mxu0 %v2457
    %2477 = vmatpush.bf16.msra.mxu0 %v2456
    %2478 = vmatmul.bf16.gmra.mxu0 %v2465
    %v2479 = vpop.f32.mrf.mxu0
    %v2480 = vadd.f32 %v2438, %v2479
    %v2481 = vpop.f32.mrf.mxu0
    %v2482 = vadd.f32 %v2438, %v2481
    %2483 = vmatmul.bf16.gmra.mxu0 %v2468
    %v2484 = vpop.f32.mrf.mxu0
    %v2485 = vadd.f32 %v2438, %v2484
    %v2486 = vpop.f32.mrf.mxu0
    %v2487 = vadd.f32 %v2438, %v2486
    %2488 = vdwg.mxu0
    %2489 = vst.msk [vmem:[#allocation10] sm:$0xff] %vm128, %v2480
    %2490 = vst.msk [vmem:[#allocation10 + $0x8] sm:$0xff] %vm128, %v2482
    %2491 = vst.msk [vmem:[#allocation10 + $0x10] sm:$0xff] %vm128, %v2485
    %2492 = vst.msk [vmem:[#allocation10 + $0x18] sm:$0xff] %vm128, %v2487
    // Predicated region
    $region30: #{tpu_custom_call.1} parent=1 // pred_check
      _
    $region31: #{tpu_custom_call.1} parent=1 // pred_check_branch
      %2494 = sbr.rel (0) target = $region33
    $region32: #{tpu_custom_call.1} parent=1 // pred_region
      %2496 = vsyncadd [#allocation6], 0
      %s2497 = sshll.u32 [#allocation10], 4
      %s2498 = int_to_ptr.vmem [resolvable:$true] %s2497
      %s2499 = sshll.u32 %s4, 4
      %s2500 = int_to_ptr.hbm [resolvable:$true] %s2499
      %2505 = dma.vmem_to_hbm [thread:$0]  %s2498, 512, %s2500, [#allocation6], 128, 128, 8
    $region33: #{tpu_custom_call.1} parent=1 // pred_fallthru
      _
    // Predicated region
    $region34: #{tpu_custom_call.1} parent=1 // pred_check
      _
    $region35: #{tpu_custom_call.1} parent=1 // pred_check_branch
      %2507 = sbr.rel (0) target = $region37
    $region36: #{tpu_custom_call.1} parent=1 // pred_region
      %2509 = dma.done [#allocation6], 512
    $region37: #{tpu_custom_call.1} parent=1 // pred_fallthru
      _
    %2510 = vsyncpa [#allocation5], 1
    %2511 = vsyncpa [#allocation8], 1
    %2512 = vsyncpa [#allocation6], 1

</llo_original>
